<compile_context>
chip_gen: v7x
topology: tpu7x:2x2x1
jax: 0.10.0
libtpu: 0.0.40
codegen_flags: <defaults>
</compile_context>

<pallas_src>
import jax
import jax.numpy as jnp
from jax.experimental import pallas as pl
from jax.experimental.pallas import tpu as pltpu

J = 21  # MANO joints incl. wrist (rtn_wrist=False drops joint 0 -> 20 = ndim['distance'])


# ----------------------------- glue: trilinear resize -----------------------------
def _resize_linear_axis(x, axis, new_size):
    old = x.shape[axis]
    if old == new_size:
        return x
    scale = old / new_size
    dst = jnp.arange(new_size, dtype=jnp.float32)
    src = (dst + 0.5) * scale - 0.5            # F.interpolate default: align_corners=False
    src = jnp.clip(src, 0.0, float(old - 1))
    lo = jnp.floor(src).astype(jnp.int32)
    hi = jnp.minimum(lo + 1, old - 1)
    w = src - lo.astype(jnp.float32)
    shape = [1] * x.ndim
    shape[axis] = new_size
    w = w.reshape(shape)
    return jnp.take(x, lo, axis=axis) * (1.0 - w) + jnp.take(x, hi, axis=axis) * w


def _trilinear_resize(x, size):
    # x: (N, C, D, H, W) -> (N, C, size, size, size); trilinear is separable.
    x = _resize_linear_axis(x, 2, size)
    x = _resize_linear_axis(x, 3, size)
    x = _resize_linear_axis(x, 4, size)
    return x


# ----------------------------- tiling helper -----------------------------
def _pick_tiling(P):
    """Pick (lane width L, sublane rows S, sublane tile S_TILE, padded P).

    Layout goal: every block is (S_TILE, L) with S_TILE % 8 == 0 and
    L % 128 == 0 so both VPU ops and stores use full (8,128) vregs.
    """
    L = None
    P_pad = P
    for cand in (512, 256, 128):
        if P % (cand * 8) == 0:
            L = cand
            break
    if L is None:                               # odd H: pad to an (8,128)-dense slab
        L = 128
        P_pad = ((P + 8 * L - 1) // (8 * L)) * (8 * L)
    S = P_pad // L
    S_TILE = 8
    for cand in (64, 32, 16, 8):                # cap block at 64 sublane rows (~MBs)
        if S % cand == 0:
            S_TILE = cand
            break
    return L, S, S_TILE, P_pad


# ----------------------------- Pallas kernel -----------------------------
def _dist_field_kernel(jts_ref, live_ref, x_ref, o_ref):
    """One (batch, voxel-tile) block of the squared-distance field.

    jts_ref : SMEM (N, 3*Jout) f32  scalar-prefetched joint coords (normalized frame)
    live_ref: SMEM (N,)        i32  1 iff pose hA has any non-zero entry
    x_ref   : VMEM (1, 3, S_TILE, L) voxel coordinates (x, y, z channels)
    o_ref   : VMEM (1, Jout, S_TILE, L)
    """
    n = pl.program_id(0)
    Jout = o_ref.shape[1]
    live = live_ref[n]

    @pl.when(live == 0)
    def _():
        # zero-pose sample: field masked to zero; only stores, no arithmetic.
        o_ref[...] = jnp.zeros_like(o_ref)

    @pl.when(live != 0)
    def _():
        xyz = x_ref[0]                         # (3, S_TILE, L), register resident
        x = xyz[0]
        y = xyz[1]
        z = xyz[2]
        for j in range(Jout):                  # unrolled; joint coords splat from SMEM
            dx = x - jts_ref[n, 3 * j + 0]
            dy = y - jts_ref[n, 3 * j + 1]
            dz = z - jts_ref[n, 3 * j + 2]
            o_ref[0, j] = (dx * dx + dy * dy + dz * dz).astype(o_ref.dtype)


# ----------------------------- wrapper -----------------------------
def forward_distance(hA, H, nXyz, nJoints, rtn_wrist=True, out_dtype=jnp.float32):
    """hA: (N,45), nXyz: (N,D0,H0,W0,3), nJoints: (N,J,3) -> (N, J or J-1, H, H, H)."""
    N = hA.shape[0]

    # trilinear resample of the normalized coordinate grid (XLA glue, = F.interpolate)
    x = jnp.transpose(nXyz, (0, 4, 1, 2, 3))                 # n d h w c -> n c d h w
    x = _trilinear_resize(x, H)                              # (N, 3, H, H, H)
    P = H * H * H
    xT = x.reshape(N, 3, P).astype(jnp.float32)

    # fused wrist drop: only compute the joints we keep
    jts = nJoints if rtn_wrist else nJoints[:, 1:]
    Jout = jts.shape[1]
    jts_flat = jts.reshape(N, 3 * Jout).astype(jnp.float32)  # -> SMEM scalar prefetch

    # zero-pose mask precomputed outside the kernel (1 = live), matches
    # torch: zero_mask = ((hA != 0).sum(-1) == 0); field *= (1 - zero_mask)
    live = (jnp.sum(hA != 0.0, axis=-1) > 0).astype(jnp.int32)

    # lane/sublane-dense layout: (N, 3, S, L) with S*L == P (padded if needed)
    L, S, S_TILE, P_pad = _pick_tiling(P)
    if P_pad != P:
        xT = jnp.pad(xT, ((0, 0), (0, 0), (0, P_pad - P)))
    x4 = xT.reshape(N, 3, S, L)

    out = pl.pallas_call(
        _dist_field_kernel,
        out_shape=jax.ShapeDtypeStruct((N, Jout, S, L), out_dtype),
        grid_spec=pltpu.PrefetchScalarGridSpec(
            num_scalar_prefetch=2,                           # jts_flat, live -> SMEM
            grid=(N, S // S_TILE),
            in_specs=[
                pl.BlockSpec((1, 3, S_TILE, L), lambda n, p, jts, lv: (n, 0, p, 0)),
            ],
            out_specs=pl.BlockSpec((1, Jout, S_TILE, L),
                                   lambda n, p, jts, lv: (n, 0, p, 0)),
        ),
        compiler_params=pltpu.CompilerParams(
            dimension_semantics=("parallel", "parallel")),
    )(jts_flat, live, x4)

    out = out.reshape(N, Jout, P_pad)
    if P_pad != P:
        out = out[:, :, :P]
    return out.reshape(N, Jout, H, H, H)


def synth_joints(hA, key):
    # TODO(synk): replace with ManopthWrapper forward kinematics + get_nTh transform
    # (nJoints = apply_transform(hJoints, nTh)); host-side, not kernelized here.
    N = hA.shape[0]
    k1, k2 = jax.random.split(key)
    base = jax.random.uniform(k1, (J, 3), minval=-0.5, maxval=0.5, dtype=jnp.float32)
    W = 0.02 * jax.random.normal(k2, (45, J * 3), dtype=jnp.float32)
    return base[None] + (hA @ W).reshape(N, J, 3)


if __name__ == "__main__":
    key = jax.random.PRNGKey(0)
    k_ha, k_j = jax.random.split(key, 2)

    N, H, D0 = 2, 16, 8
    hA = 0.1 * jax.random.normal(k_ha, (N, 45), dtype=jnp.float32)
    hA = hA.at[1].set(0.0)   # second sample: all-zero pose -> field is masked to zero

    # normalized sdf grid, layout n d h w c (as produced by mesh_utils.create_sdf_grid)
    lin = jnp.linspace(-1.0, 1.0, D0, dtype=jnp.float32)
    zz, yy, xx = jnp.meshgrid(lin, lin, lin, indexing="ij")
    grid = jnp.stack([xx, yy, zz], axis=-1)                  # (D0, D0, D0, 3)
    nXyz = jnp.broadcast_to(grid[None], (N, D0, D0, D0, 3)).astype(jnp.float32)

    nJoints = synth_joints(hA, k_j)

    out = forward_distance(hA, H, nXyz, nJoints, rtn_wrist=True)
    out = jax.block_until_ready(out)
    assert out.shape == (N, J, H, H, H), out.shape

    # pure-JAX reference (same math) for numerical check
    xr = _trilinear_resize(jnp.transpose(nXyz, (0, 4, 1, 2, 3)), H)      # (N,3,H,H,H)
    pts = jnp.transpose(xr.reshape(N, 3, -1), (0, 2, 1))                 # (N,P,3)
    ref = jnp.sum((pts[:, None, :, :] - nJoints[:, :, None, :]) ** 2, axis=-1)
    live_ref = (jnp.sum(hA != 0.0, axis=-1) > 0).astype(jnp.float32)
    ref = (ref * live_ref[:, None, None]).reshape(N, J, H, H, H)
    assert jnp.allclose(out, ref, atol=1e-5, rtol=1e-5), float(jnp.max(jnp.abs(out - ref)))

    assert bool(jnp.all(out[1] == 0.0))          # zero-pose sample masked out
    assert bool(jnp.all(out[0] >= 0.0))          # squared distances are non-negative

    # fused wrist-drop path (ndim['distance'] = 20 channels)
    out_nw = forward_distance(hA, H, nXyz, nJoints, rtn_wrist=False)
    out_nw = jax.block_until_ready(out_nw)
    assert out_nw.shape == (N, J - 1, H, H, H), out_nw.shape
    assert jnp.allclose(out_nw, ref[:, 1:], atol=1e-5, rtol=1e-5)

    print("KERNEL_OK")
</pallas_src>

<mosaic_0001>
module attributes {stable_mosaic.version = 11 : i64} {
  func.func @_dist_field_kernel(%arg0: i32, %arg1: i32, %arg2: memref<2x63xf32, #tpu.memory_space<smem>>, %arg3: memref<2xi32, #tpu.memory_space<smem>>, %arg4: memref<1x3x8x512xf32, #tpu.memory_space<vmem>>, %arg5: memref<1x21x8x512xf32, #tpu.memory_space<vmem>>) attributes {dimension_semantics = [#tpu.dimension_semantics<parallel>, #tpu.dimension_semantics<parallel>], iteration_bounds = array<i64: 2, 1>, scalar_prefetch = 2 : i64, scratch_operands = 0 : i64, tpu.core_type = #tpu.core_type<tc>, window_params = [{transform_indices = @transform_0, window_bounds = array<i64: 1, 3, 8, 512>}, {transform_indices = @transform_1, window_bounds = array<i64: 1, 21, 8, 512>}]} {
    %0 = arith.index_cast %arg0 : i32 to index
    %1 = memref.load %arg3[%0] : memref<2xi32, #tpu.memory_space<smem>>
    %c0_i32 = arith.constant 0 : i32
    %2 = arith.cmpi eq, %1, %c0_i32 : i32
    %3 = arith.extui %2 : i1 to i32
    %c0_i32_0 = arith.constant 0 : i32
    %4 = arith.cmpi ne, %3, %c0_i32_0 : i32
    scf.if %4 {
      %cst = arith.constant 0.000000e+00 : f32
      %8 = vector.broadcast %cst : f32 to vector<1x21x8x512xf32>
      %c0 = arith.constant 0 : index
      %c0_3 = arith.constant 0 : index
      %c0_4 = arith.constant 0 : index
      %c0_5 = arith.constant 0 : index
      %9 = vector.load %arg5[%c0, %c0_3, %c0_4, %c0_5] : memref<1x21x8x512xf32, #tpu.memory_space<vmem>>, vector<1x21x8x512xf32>
      tpu.vector_store %arg5[%c0, %c0_3, %c0_4, %c0_5], %8 {strides = array<i32>} : memref<1x21x8x512xf32, #tpu.memory_space<vmem>>, vector<1x21x8x512xf32>,
    } else {
    }
    %c0_i32_1 = arith.constant 0 : i32
    %5 = arith.cmpi ne, %1, %c0_i32_1 : i32
    %6 = arith.extui %5 : i1 to i32
    %c0_i32_2 = arith.constant 0 : i32
    %7 = arith.cmpi ne, %6, %c0_i32_2 : i32
    scf.if %7 {
      %c0 = arith.constant 0 : index
      %c0_3 = arith.constant 0 : index
      %c0_4 = arith.constant 0 : index
      %c0_5 = arith.constant 0 : index
      %8 = vector.load %arg4[%c0, %c0_3, %c0_4, %c0_5] : memref<1x3x8x512xf32, #tpu.memory_space<vmem>>, vector<1x3x8x512xf32>
      %9 = vector.shape_cast %8 : vector<1x3x8x512xf32> to vector<3x8x512xf32>
      %10 = vector.extract_strided_slice %9 {offsets = [0, 0, 0], sizes = [1, 8, 512], strides = [1, 1, 1]} : vector<3x8x512xf32> to vector<1x8x512xf32>
      %11 = vector.shape_cast %10 : vector<1x8x512xf32> to vector<8x512xf32>
      %12 = vector.extract_strided_slice %9 {offsets = [1, 0, 0], sizes = [1, 8, 512], strides = [1, 1, 1]} : vector<3x8x512xf32> to vector<1x8x512xf32>
      %13 = vector.shape_cast %12 : vector<1x8x512xf32> to vector<8x512xf32>
      %14 = vector.extract_strided_slice %9 {offsets = [2, 0, 0], sizes = [1, 8, 512], strides = [1, 1, 1]} : vector<3x8x512xf32> to vector<1x8x512xf32>
      %15 = vector.shape_cast %14 : vector<1x8x512xf32> to vector<8x512xf32>
      %16 = arith.index_cast %arg0 : i32 to index
      %c0_6 = arith.constant 0 : index
      %17 = memref.load %arg2[%16, %c0_6] : memref<2x63xf32, #tpu.memory_space<smem>>
      %18 = vector.broadcast %17 : f32 to vector<8x512xf32>
      %19 = arith.subf %11, %18 : vector<8x512xf32>
      %20 = arith.index_cast %arg0 : i32 to index
      %c1 = arith.constant 1 : index
      %21 = memref.load %arg2[%20, %c1] : memref<2x63xf32, #tpu.memory_space<smem>>
      %22 = vector.broadcast %21 : f32 to vector<8x512xf32>
      %23 = arith.subf %13, %22 : vector<8x512xf32>
      %24 = arith.index_cast %arg0 : i32 to index
      %c2 = arith.constant 2 : index
      %25 = memref.load %arg2[%24, %c2] : memref<2x63xf32, #tpu.memory_space<smem>>
      %26 = vector.broadcast %25 : f32 to vector<8x512xf32>
      %27 = arith.subf %15, %26 : vector<8x512xf32>
      %28 = arith.mulf %19, %19 : vector<8x512xf32>
      %29 = arith.mulf %23, %23 : vector<8x512xf32>
      %30 = arith.addf %28, %29 : vector<8x512xf32>
      %31 = arith.mulf %27, %27 : vector<8x512xf32>
      %32 = arith.addf %30, %31 : vector<8x512xf32>
      %c0_7 = arith.constant 0 : index
      %c0_8 = arith.constant 0 : index
      %c0_9 = arith.constant 0 : index
      %c0_10 = arith.constant 0 : index
      %33 = vector.load %arg5[%c0_7, %c0_8, %c0_9, %c0_10] : memref<1x21x8x512xf32, #tpu.memory_space<vmem>>, vector<1x1x8x512xf32>
      %34 = vector.shape_cast %33 : vector<1x1x8x512xf32> to vector<8x512xf32>
      %35 = vector.shape_cast %32 : vector<8x512xf32> to vector<1x1x8x512xf32>
      tpu.vector_store %arg5[%c0_7, %c0_8, %c0_9, %c0_10], %35 {strides = array<i32>} : memref<1x21x8x512xf32, #tpu.memory_space<vmem>>, vector<1x1x8x512xf32>,
      %36 = arith.index_cast %arg0 : i32 to index
      %c3 = arith.constant 3 : index
      %37 = memref.load %arg2[%36, %c3] : memref<2x63xf32, #tpu.memory_space<smem>>
      %38 = vector.broadcast %37 : f32 to vector<8x512xf32>
      %39 = arith.subf %11, %38 : vector<8x512xf32>
      %40 = arith.index_cast %arg0 : i32 to index
      %c4 = arith.constant 4 : index
      %41 = memref.load %arg2[%40, %c4] : memref<2x63xf32, #tpu.memory_space<smem>>
      %42 = vector.broadcast %41 : f32 to vector<8x512xf32>
      %43 = arith.subf %13, %42 : vector<8x512xf32>
      %44 = arith.index_cast %arg0 : i32 to index
      %c5 = arith.constant 5 : index
      %45 = memref.load %arg2[%44, %c5] : memref<2x63xf32, #tpu.memory_space<smem>>
      %46 = vector.broadcast %45 : f32 to vector<8x512xf32>
      %47 = arith.subf %15, %46 : vector<8x512xf32>
      %48 = arith.mulf %39, %39 : vector<8x512xf32>
      %49 = arith.mulf %43, %43 : vector<8x512xf32>
      %50 = arith.addf %48, %49 : vector<8x512xf32>
      %51 = arith.mulf %47, %47 : vector<8x512xf32>
      %52 = arith.addf %50, %51 : vector<8x512xf32>
      %c0_11 = arith.constant 0 : index
      %c1_12 = arith.constant 1 : index
      %c0_13 = arith.constant 0 : index
      %c0_14 = arith.constant 0 : index
      %53 = vector.load %arg5[%c0_11, %c1_12, %c0_13, %c0_14] : memref<1x21x8x512xf32, #tpu.memory_space<vmem>>, vector<1x1x8x512xf32>
      %54 = vector.shape_cast %53 : vector<1x1x8x512xf32> to vector<8x512xf32>
      %55 = vector.shape_cast %52 : vector<8x512xf32> to vector<1x1x8x512xf32>
      tpu.vector_store %arg5[%c0_11, %c1_12, %c0_13, %c0_14], %55 {strides = array<i32>} : memref<1x21x8x512xf32, #tpu.memory_space<vmem>>, vector<1x1x8x512xf32>,
      %56 = arith.index_cast %arg0 : i32 to index
      %c6 = arith.constant 6 : index
      %57 = memref.load %arg2[%56, %c6] : memref<2x63xf32, #tpu.memory_space<smem>>
      %58 = vector.broadcast %57 : f32 to vector<8x512xf32>
      %59 = arith.subf %11, %58 : vector<8x512xf32>
      %60 = arith.index_cast %arg0 : i32 to index
      %c7 = arith.constant 7 : index
      %61 = memref.load %arg2[%60, %c7] : memref<2x63xf32, #tpu.memory_space<smem>>
      %62 = vector.broadcast %61 : f32 to vector<8x512xf32>
      %63 = arith.subf %13, %62 : vector<8x512xf32>
      %64 = arith.index_cast %arg0 : i32 to index
      %c8 = arith.constant 8 : index
      %65 = memref.load %arg2[%64, %c8] : memref<2x63xf32, #tpu.memory_space<smem>>
      %66 = vector.broadcast %65 : f32 to vector<8x512xf32>
      %67 = arith.subf %15, %66 : vector<8x512xf32>
      %68 = arith.mulf %59, %59 : vector<8x512xf32>
      %69 = arith.mulf %63, %63 : vector<8x512xf32>
      %70 = arith.addf %68, %69 : vector<8x512xf32>
      %71 = arith.mulf %67, %67 : vector<8x512xf32>
      %72 = arith.addf %70, %71 : vector<8x512xf32>
      %c0_15 = arith.constant 0 : index
      %c2_16 = arith.constant 2 : index
      %c0_17 = arith.constant 0 : index
      %c0_18 = arith.constant 0 : index
      %73 = vector.load %arg5[%c0_15, %c2_16, %c0_17, %c0_18] : memref<1x21x8x512xf32, #tpu.memory_space<vmem>>, vector<1x1x8x512xf32>
      %74 = vector.shape_cast %73 : vector<1x1x8x512xf32> to vector<8x512xf32>
      %75 = vector.shape_cast %72 : vector<8x512xf32> to vector<1x1x8x512xf32>
      tpu.vector_store %arg5[%c0_15, %c2_16, %c0_17, %c0_18], %75 {strides = array<i32>} : memref<1x21x8x512xf32, #tpu.memory_space<vmem>>, vector<1x1x8x512xf32>,
      %76 = arith.index_cast %arg0 : i32 to index
      %c9 = arith.constant 9 : index
      %77 = memref.load %arg2[%76, %c9] : memref<2x63xf32, #tpu.memory_space<smem>>
      %78 = vector.broadcast %77 : f32 to vector<8x512xf32>
      %79 = arith.subf %11, %78 : vector<8x512xf32>
      %80 = arith.index_cast %arg0 : i32 to index
      %c10 = arith.constant 10 : index
      %81 = memref.load %arg2[%80, %c10] : memref<2x63xf32, #tpu.memory_space<smem>>
      %82 = vector.broadcast %81 : f32 to vector<8x512xf32>
      %83 = arith.subf %13, %82 : vector<8x512xf32>
      %84 = arith.index_cast %arg0 : i32 to index
      %c11 = arith.constant 11 : index
      %85 = memref.load %arg2[%84, %c11] : memref<2x63xf32, #tpu.memory_space<smem>>
      %86 = vector.broadcast %85 : f32 to vector<8x512xf32>
      %87 = arith.subf %15, %86 : vector<8x512xf32>
      %88 = arith.mulf %79, %79 : vector<8x512xf32>
      %89 = arith.mulf %83, %83 : vector<8x512xf32>
      %90 = arith.addf %88, %89 : vector<8x512xf32>
      %91 = arith.mulf %87, %87 : vector<8x512xf32>
      %92 = arith.addf %90, %91 : vector<8x512xf32>
      %c0_19 = arith.constant 0 : index
      %c3_20 = arith.constant 3 : index
      %c0_21 = arith.constant 0 : index
      %c0_22 = arith.constant 0 : index
      %93 = vector.load %arg5[%c0_19, %c3_20, %c0_21, %c0_22] : memref<1x21x8x512xf32, #tpu.memory_space<vmem>>, vector<1x1x8x512xf32>
      %94 = vector.shape_cast %93 : vector<1x1x8x512xf32> to vector<8x512xf32>
      %95 = vector.shape_cast %92 : vector<8x512xf32> to vector<1x1x8x512xf32>
      tpu.vector_store %arg5[%c0_19, %c3_20, %c0_21, %c0_22], %95 {strides = array<i32>} : memref<1x21x8x512xf32, #tpu.memory_space<vmem>>, vector<1x1x8x512xf32>,
      %96 = arith.index_cast %arg0 : i32 to index
      %c12 = arith.constant 12 : index
      %97 = memref.load %arg2[%96, %c12] : memref<2x63xf32, #tpu.memory_space<smem>>
      %98 = vector.broadcast %97 : f32 to vector<8x512xf32>
      %99 = arith.subf %11, %98 : vector<8x512xf32>
      %100 = arith.index_cast %arg0 : i32 to index
      %c13 = arith.constant 13 : index
      %101 = memref.load %arg2[%100, %c13] : memref<2x63xf32, #tpu.memory_space<smem>>
      %102 = vector.broadcast %101 : f32 to vector<8x512xf32>
      %103 = arith.subf %13, %102 : vector<8x512xf32>
      %104 = arith.index_cast %arg0 : i32 to index
      %c14 = arith.constant 14 : index
      %105 = memref.load %arg2[%104, %c14] : memref<2x63xf32, #tpu.memory_space<smem>>
      %106 = vector.broadcast %105 : f32 to vector<8x512xf32>
      %107 = arith.subf %15, %106 : vector<8x512xf32>
      %108 = arith.mulf %99, %99 : vector<8x512xf32>
      %109 = arith.mulf %103, %103 : vector<8x512xf32>
      %110 = arith.addf %108, %109 : vector<8x512xf32>
      %111 = arith.mulf %107, %107 : vector<8x512xf32>
      %112 = arith.addf %110, %111 : vector<8x512xf32>
      %c0_23 = arith.constant 0 : index
      %c4_24 = arith.constant 4 : index
      %c0_25 = arith.constant 0 : index
      %c0_26 = arith.constant 0 : index
      %113 = vector.load %arg5[%c0_23, %c4_24, %c0_25, %c0_26] : memref<1x21x8x512xf32, #tpu.memory_space<vmem>>, vector<1x1x8x512xf32>
      %114 = vector.shape_cast %113 : vector<1x1x8x512xf32> to vector<8x512xf32>
      %115 = vector.shape_cast %112 : vector<8x512xf32> to vector<1x1x8x512xf32>
      tpu.vector_store %arg5[%c0_23, %c4_24, %c0_25, %c0_26], %115 {strides = array<i32>} : memref<1x21x8x512xf32, #tpu.memory_space<vmem>>, vector<1x1x8x512xf32>,
      %116 = arith.index_cast %arg0 : i32 to index
      %c15 = arith.constant 15 : index
      %117 = memref.load %arg2[%116, %c15] : memref<2x63xf32, #tpu.memory_space<smem>>
      %118 = vector.broadcast %117 : f32 to vector<8x512xf32>
      %119 = arith.subf %11, %118 : vector<8x512xf32>
      %120 = arith.index_cast %arg0 : i32 to index
      %c16 = arith.constant 16 : index
      %121 = memref.load %arg2[%120, %c16] : memref<2x63xf32, #tpu.memory_space<smem>>
      %122 = vector.broadcast %121 : f32 to vector<8x512xf32>
      %123 = arith.subf %13, %122 : vector<8x512xf32>
      %124 = arith.index_cast %arg0 : i32 to index
      %c17 = arith.constant 17 : index
      %125 = memref.load %arg2[%124, %c17] : memref<2x63xf32, #tpu.memory_space<smem>>
      %126 = vector.broadcast %125 : f32 to vector<8x512xf32>
      %127 = arith.subf %15, %126 : vector<8x512xf32>
      %128 = arith.mulf %119, %119 : vector<8x512xf32>
      %129 = arith.mulf %123, %123 : vector<8x512xf32>
      %130 = arith.addf %128, %129 : vector<8x512xf32>
      %131 = arith.mulf %127, %127 : vector<8x512xf32>
      %132 = arith.addf %130, %131 : vector<8x512xf32>
      %c0_27 = arith.constant 0 : index
      %c5_28 = arith.constant 5 : index
      %c0_29 = arith.constant 0 : index
      %c0_30 = arith.constant 0 : index
      %133 = vector.load %arg5[%c0_27, %c5_28, %c0_29, %c0_30] : memref<1x21x8x512xf32, #tpu.memory_space<vmem>>, vector<1x1x8x512xf32>
      %134 = vector.shape_cast %133 : vector<1x1x8x512xf32> to vector<8x512xf32>
      %135 = vector.shape_cast %132 : vector<8x512xf32> to vector<1x1x8x512xf32>
      tpu.vector_store %arg5[%c0_27, %c5_28, %c0_29, %c0_30], %135 {strides = array<i32>} : memref<1x21x8x512xf32, #tpu.memory_space<vmem>>, vector<1x1x8x512xf32>,
      %136 = arith.index_cast %arg0 : i32 to index
      %c18 = arith.constant 18 : index
      %137 = memref.load %arg2[%136, %c18] : memref<2x63xf32, #tpu.memory_space<smem>>
      %138 = vector.broadcast %137 : f32 to vector<8x512xf32>
      %139 = arith.subf %11, %138 : vector<8x512xf32>
      %140 = arith.index_cast %arg0 : i32 to index
      %c19 = arith.constant 19 : index
      %141 = memref.load %arg2[%140, %c19] : memref<2x63xf32, #tpu.memory_space<smem>>
      %142 = vector.broadcast %141 : f32 to vector<8x512xf32>
      %143 = arith.subf %13, %142 : vector<8x512xf32>
      %144 = arith.index_cast %arg0 : i32 to index
      %c20 = arith.constant 20 : index
      %145 = memref.load %arg2[%144, %c20] : memref<2x63xf32, #tpu.memory_space<smem>>
      %146 = vector.broadcast %145 : f32 to vector<8x512xf32>
      %147 = arith.subf %15, %146 : vector<8x512xf32>
      %148 = arith.mulf %139, %139 : vector<8x512xf32>
      %149 = arith.mulf %143, %143 : vector<8x512xf32>
      %150 = arith.addf %148, %149 : vector<8x512xf32>
      %151 = arith.mulf %147, %147 : vector<8x512xf32>
      %152 = arith.addf %150, %151 : vector<8x512xf32>
      %c0_31 = arith.constant 0 : index
      %c6_32 = arith.constant 6 : index
      %c0_33 = arith.constant 0 : index
      %c0_34 = arith.constant 0 : index
      %153 = vector.load %arg5[%c0_31, %c6_32, %c0_33, %c0_34] : memref<1x21x8x512xf32, #tpu.memory_space<vmem>>, vector<1x1x8x512xf32>
      %154 = vector.shape_cast %153 : vector<1x1x8x512xf32> to vector<8x512xf32>
      %155 = vector.shape_cast %152 : vector<8x512xf32> to vector<1x1x8x512xf32>
      tpu.vector_store %arg5[%c0_31, %c6_32, %c0_33, %c0_34], %155 {strides = array<i32>} : memref<1x21x8x512xf32, #tpu.memory_space<vmem>>, vector<1x1x8x512xf32>,
      %156 = arith.index_cast %arg0 : i32 to index
      %c21 = arith.constant 21 : index
      %157 = memref.load %arg2[%156, %c21] : memref<2x63xf32, #tpu.memory_space<smem>>
      %158 = vector.broadcast %157 : f32 to vector<8x512xf32>
      %159 = arith.subf %11, %158 : vector<8x512xf32>
      %160 = arith.index_cast %arg0 : i32 to index
      %c22 = arith.constant 22 : index
      %161 = memref.load %arg2[%160, %c22] : memref<2x63xf32, #tpu.memory_space<smem>>
      %162 = vector.broadcast %161 : f32 to vector<8x512xf32>
      %163 = arith.subf %13, %162 : vector<8x512xf32>
      %164 = arith.index_cast %arg0 : i32 to index
      %c23 = arith.constant 23 : index
      %165 = memref.load %arg2[%164, %c23] : memref<2x63xf32, #tpu.memory_space<smem>>
      %166 = vector.broadcast %165 : f32 to vector<8x512xf32>
      %167 = arith.subf %15, %166 : vector<8x512xf32>
      %168 = arith.mulf %159, %159 : vector<8x512xf32>
      %169 = arith.mulf %163, %163 : vector<8x512xf32>
      %170 = arith.addf %168, %169 : vector<8x512xf32>
      %171 = arith.mulf %167, %167 : vector<8x512xf32>
      %172 = arith.addf %170, %171 : vector<8x512xf32>
      %c0_35 = arith.constant 0 : index
      %c7_36 = arith.constant 7 : index
      %c0_37 = arith.constant 0 : index
      %c0_38 = arith.constant 0 : index
      %173 = vector.load %arg5[%c0_35, %c7_36, %c0_37, %c0_38] : memref<1x21x8x512xf32, #tpu.memory_space<vmem>>, vector<1x1x8x512xf32>
      %174 = vector.shape_cast %173 : vector<1x1x8x512xf32> to vector<8x512xf32>
      %175 = vector.shape_cast %172 : vector<8x512xf32> to vector<1x1x8x512xf32>
      tpu.vector_store %arg5[%c0_35, %c7_36, %c0_37, %c0_38], %175 {strides = array<i32>} : memref<1x21x8x512xf32, #tpu.memory_space<vmem>>, vector<1x1x8x512xf32>,
      %176 = arith.index_cast %arg0 : i32 to index
      %c24 = arith.constant 24 : index
      %177 = memref.load %arg2[%176, %c24] : memref<2x63xf32, #tpu.memory_space<smem>>
      %178 = vector.broadcast %177 : f32 to vector<8x512xf32>
      %179 = arith.subf %11, %178 : vector<8x512xf32>
      %180 = arith.index_cast %arg0 : i32 to index
      %c25 = arith.constant 25 : index
      %181 = memref.load %arg2[%180, %c25] : memref<2x63xf32, #tpu.memory_space<smem>>
      %182 = vector.broadcast %181 : f32 to vector<8x512xf32>
      %183 = arith.subf %13, %182 : vector<8x512xf32>
      %184 = arith.index_cast %arg0 : i32 to index
      %c26 = arith.constant 26 : index
      %185 = memref.load %arg2[%184, %c26] : memref<2x63xf32, #tpu.memory_space<smem>>
      %186 = vector.broadcast %185 : f32 to vector<8x512xf32>
      %187 = arith.subf %15, %186 : vector<8x512xf32>
      %188 = arith.mulf %179, %179 : vector<8x512xf32>
      %189 = arith.mulf %183, %183 : vector<8x512xf32>
      %190 = arith.addf %188, %189 : vector<8x512xf32>
      %191 = arith.mulf %187, %187 : vector<8x512xf32>
      %192 = arith.addf %190, %191 : vector<8x512xf32>
      %c0_39 = arith.constant 0 : index
      %c8_40 = arith.constant 8 : index
      %c0_41 = arith.constant 0 : index
      %c0_42 = arith.constant 0 : index
      %193 = vector.load %arg5[%c0_39, %c8_40, %c0_41, %c0_42] : memref<1x21x8x512xf32, #tpu.memory_space<vmem>>, vector<1x1x8x512xf32>
      %194 = vector.shape_cast %193 : vector<1x1x8x512xf32> to vector<8x512xf32>
      %195 = vector.shape_cast %192 : vector<8x512xf32> to vector<1x1x8x512xf32>
      tpu.vector_store %arg5[%c0_39, %c8_40, %c0_41, %c0_42], %195 {strides = array<i32>} : memref<1x21x8x512xf32, #tpu.memory_space<vmem>>, vector<1x1x8x512xf32>,
      %196 = arith.index_cast %arg0 : i32 to index
      %c27 = arith.constant 27 : index
      %197 = memref.load %arg2[%196, %c27] : memref<2x63xf32, #tpu.memory_space<smem>>
      %198 = vector.broadcast %197 : f32 to vector<8x512xf32>
      %199 = arith.subf %11, %198 : vector<8x512xf32>
      %200 = arith.index_cast %arg0 : i32 to index
      %c28 = arith.constant 28 : index
      %201 = memref.load %arg2[%200, %c28] : memref<2x63xf32, #tpu.memory_space<smem>>
      %202 = vector.broadcast %201 : f32 to vector<8x512xf32>
      %203 = arith.subf %13, %202 : vector<8x512xf32>
      %204 = arith.index_cast %arg0 : i32 to index
      %c29 = arith.constant 29 : index
      %205 = memref.load %arg2[%204, %c29] : memref<2x63xf32, #tpu.memory_space<smem>>
      %206 = vector.broadcast %205 : f32 to vector<8x512xf32>
      %207 = arith.subf %15, %206 : vector<8x512xf32>
      %208 = arith.mulf %199, %199 : vector<8x512xf32>
      %209 = arith.mulf %203, %203 : vector<8x512xf32>
      %210 = arith.addf %208, %209 : vector<8x512xf32>
      %211 = arith.mulf %207, %207 : vector<8x512xf32>
      %212 = arith.addf %210, %211 : vector<8x512xf32>
      %c0_43 = arith.constant 0 : index
      %c9_44 = arith.constant 9 : index
      %c0_45 = arith.constant 0 : index
      %c0_46 = arith.constant 0 : index
      %213 = vector.load %arg5[%c0_43, %c9_44, %c0_45, %c0_46] : memref<1x21x8x512xf32, #tpu.memory_space<vmem>>, vector<1x1x8x512xf32>
      %214 = vector.shape_cast %213 : vector<1x1x8x512xf32> to vector<8x512xf32>
      %215 = vector.shape_cast %212 : vector<8x512xf32> to vector<1x1x8x512xf32>
      tpu.vector_store %arg5[%c0_43, %c9_44, %c0_45, %c0_46], %215 {strides = array<i32>} : memref<1x21x8x512xf32, #tpu.memory_space<vmem>>, vector<1x1x8x512xf32>,
      %216 = arith.index_cast %arg0 : i32 to index
      %c30 = arith.constant 30 : index
      %217 = memref.load %arg2[%216, %c30] : memref<2x63xf32, #tpu.memory_space<smem>>
      %218 = vector.broadcast %217 : f32 to vector<8x512xf32>
      %219 = arith.subf %11, %218 : vector<8x512xf32>
      %220 = arith.index_cast %arg0 : i32 to index
      %c31 = arith.constant 31 : index
      %221 = memref.load %arg2[%220, %c31] : memref<2x63xf32, #tpu.memory_space<smem>>
      %222 = vector.broadcast %221 : f32 to vector<8x512xf32>
      %223 = arith.subf %13, %222 : vector<8x512xf32>
      %224 = arith.index_cast %arg0 : i32 to index
      %c32 = arith.constant 32 : index
      %225 = memref.load %arg2[%224, %c32] : memref<2x63xf32, #tpu.memory_space<smem>>
      %226 = vector.broadcast %225 : f32 to vector<8x512xf32>
      %227 = arith.subf %15, %226 : vector<8x512xf32>
      %228 = arith.mulf %219, %219 : vector<8x512xf32>
      %229 = arith.mulf %223, %223 : vector<8x512xf32>
      %230 = arith.addf %228, %229 : vector<8x512xf32>
      %231 = arith.mulf %227, %227 : vector<8x512xf32>
      %232 = arith.addf %230, %231 : vector<8x512xf32>
      %c0_47 = arith.constant 0 : index
      %c10_48 = arith.constant 10 : index
      %c0_49 = arith.constant 0 : index
      %c0_50 = arith.constant 0 : index
      %233 = vector.load %arg5[%c0_47, %c10_48, %c0_49, %c0_50] : memref<1x21x8x512xf32, #tpu.memory_space<vmem>>, vector<1x1x8x512xf32>
      %234 = vector.shape_cast %233 : vector<1x1x8x512xf32> to vector<8x512xf32>
      %235 = vector.shape_cast %232 : vector<8x512xf32> to vector<1x1x8x512xf32>
      tpu.vector_store %arg5[%c0_47, %c10_48, %c0_49, %c0_50], %235 {strides = array<i32>} : memref<1x21x8x512xf32, #tpu.memory_space<vmem>>, vector<1x1x8x512xf32>,
      %236 = arith.index_cast %arg0 : i32 to index
      %c33 = arith.constant 33 : index
      %237 = memref.load %arg2[%236, %c33] : memref<2x63xf32, #tpu.memory_space<smem>>
      %238 = vector.broadcast %237 : f32 to vector<8x512xf32>
      %239 = arith.subf %11, %238 : vector<8x512xf32>
      %240 = arith.index_cast %arg0 : i32 to index
      %c34 = arith.constant 34 : index
      %241 = memref.load %arg2[%240, %c34] : memref<2x63xf32, #tpu.memory_space<smem>>
      %242 = vector.broadcast %241 : f32 to vector<8x512xf32>
      %243 = arith.subf %13, %242 : vector<8x512xf32>
      %244 = arith.index_cast %arg0 : i32 to index
      %c35 = arith.constant 35 : index
      %245 = memref.load %arg2[%244, %c35] : memref<2x63xf32, #tpu.memory_space<smem>>
      %246 = vector.broadcast %245 : f32 to vector<8x512xf32>
      %247 = arith.subf %15, %246 : vector<8x512xf32>
      %248 = arith.mulf %239, %239 : vector<8x512xf32>
      %249 = arith.mulf %243, %243 : vector<8x512xf32>
      %250 = arith.addf %248, %249 : vector<8x512xf32>
      %251 = arith.mulf %247, %247 : vector<8x512xf32>
      %252 = arith.addf %250, %251 : vector<8x512xf32>
      %c0_51 = arith.constant 0 : index
      %c11_52 = arith.constant 11 : index
      %c0_53 = arith.constant 0 : index
      %c0_54 = arith.constant 0 : index
      %253 = vector.load %arg5[%c0_51, %c11_52, %c0_53, %c0_54] : memref<1x21x8x512xf32, #tpu.memory_space<vmem>>, vector<1x1x8x512xf32>
      %254 = vector.shape_cast %253 : vector<1x1x8x512xf32> to vector<8x512xf32>
      %255 = vector.shape_cast %252 : vector<8x512xf32> to vector<1x1x8x512xf32>
      tpu.vector_store %arg5[%c0_51, %c11_52, %c0_53, %c0_54], %255 {strides = array<i32>} : memref<1x21x8x512xf32, #tpu.memory_space<vmem>>, vector<1x1x8x512xf32>,
      %256 = arith.index_cast %arg0 : i32 to index
      %c36 = arith.constant 36 : index
      %257 = memref.load %arg2[%256, %c36] : memref<2x63xf32, #tpu.memory_space<smem>>
      %258 = vector.broadcast %257 : f32 to vector<8x512xf32>
      %259 = arith.subf %11, %258 : vector<8x512xf32>
      %260 = arith.index_cast %arg0 : i32 to index
      %c37 = arith.constant 37 : index
      %261 = memref.load %arg2[%260, %c37] : memref<2x63xf32, #tpu.memory_space<smem>>
      %262 = vector.broadcast %261 : f32 to vector<8x512xf32>
      %263 = arith.subf %13, %262 : vector<8x512xf32>
      %264 = arith.index_cast %arg0 : i32 to index
      %c38 = arith.constant 38 : index
      %265 = memref.load %arg2[%264, %c38] : memref<2x63xf32, #tpu.memory_space<smem>>
      %266 = vector.broadcast %265 : f32 to vector<8x512xf32>
      %267 = arith.subf %15, %266 : vector<8x512xf32>
      %268 = arith.mulf %259, %259 : vector<8x512xf32>
      %269 = arith.mulf %263, %263 : vector<8x512xf32>
      %270 = arith.addf %268, %269 : vector<8x512xf32>
      %271 = arith.mulf %267, %267 : vector<8x512xf32>
      %272 = arith.addf %270, %271 : vector<8x512xf32>
      %c0_55 = arith.constant 0 : index
      %c12_56 = arith.constant 12 : index
      %c0_57 = arith.constant 0 : index
      %c0_58 = arith.constant 0 : index
      %273 = vector.load %arg5[%c0_55, %c12_56, %c0_57, %c0_58] : memref<1x21x8x512xf32, #tpu.memory_space<vmem>>, vector<1x1x8x512xf32>
      %274 = vector.shape_cast %273 : vector<1x1x8x512xf32> to vector<8x512xf32>
      %275 = vector.shape_cast %272 : vector<8x512xf32> to vector<1x1x8x512xf32>
      tpu.vector_store %arg5[%c0_55, %c12_56, %c0_57, %c0_58], %275 {strides = array<i32>} : memref<1x21x8x512xf32, #tpu.memory_space<vmem>>, vector<1x1x8x512xf32>,
      %276 = arith.index_cast %arg0 : i32 to index
      %c39 = arith.constant 39 : index
      %277 = memref.load %arg2[%276, %c39] : memref<2x63xf32, #tpu.memory_space<smem>>
      %278 = vector.broadcast %277 : f32 to vector<8x512xf32>
      %279 = arith.subf %11, %278 : vector<8x512xf32>
      %280 = arith.index_cast %arg0 : i32 to index
      %c40 = arith.constant 40 : index
      %281 = memref.load %arg2[%280, %c40] : memref<2x63xf32, #tpu.memory_space<smem>>
      %282 = vector.broadcast %281 : f32 to vector<8x512xf32>
      %283 = arith.subf %13, %282 : vector<8x512xf32>
      %284 = arith.index_cast %arg0 : i32 to index
      %c41 = arith.constant 41 : index
      %285 = memref.load %arg2[%284, %c41] : memref<2x63xf32, #tpu.memory_space<smem>>
      %286 = vector.broadcast %285 : f32 to vector<8x512xf32>
      %287 = arith.subf %15, %286 : vector<8x512xf32>
      %288 = arith.mulf %279, %279 : vector<8x512xf32>
      %289 = arith.mulf %283, %283 : vector<8x512xf32>
      %290 = arith.addf %288, %289 : vector<8x512xf32>
      %291 = arith.mulf %287, %287 : vector<8x512xf32>
      %292 = arith.addf %290, %291 : vector<8x512xf32>
      %c0_59 = arith.constant 0 : index
      %c13_60 = arith.constant 13 : index
      %c0_61 = arith.constant 0 : index
      %c0_62 = arith.constant 0 : index
      %293 = vector.load %arg5[%c0_59, %c13_60, %c0_61, %c0_62] : memref<1x21x8x512xf32, #tpu.memory_space<vmem>>, vector<1x1x8x512xf32>
      %294 = vector.shape_cast %293 : vector<1x1x8x512xf32> to vector<8x512xf32>
      %295 = vector.shape_cast %292 : vector<8x512xf32> to vector<1x1x8x512xf32>
      tpu.vector_store %arg5[%c0_59, %c13_60, %c0_61, %c0_62], %295 {strides = array<i32>} : memref<1x21x8x512xf32, #tpu.memory_space<vmem>>, vector<1x1x8x512xf32>,
      %296 = arith.index_cast %arg0 : i32 to index
      %c42 = arith.constant 42 : index
      %297 = memref.load %arg2[%296, %c42] : memref<2x63xf32, #tpu.memory_space<smem>>
      %298 = vector.broadcast %297 : f32 to vector<8x512xf32>
      %299 = arith.subf %11, %298 : vector<8x512xf32>
      %300 = arith.index_cast %arg0 : i32 to index
      %c43 = arith.constant 43 : index
      %301 = memref.load %arg2[%300, %c43] : memref<2x63xf32, #tpu.memory_space<smem>>
      %302 = vector.broadcast %301 : f32 to vector<8x512xf32>
      %303 = arith.subf %13, %302 : vector<8x512xf32>
      %304 = arith.index_cast %arg0 : i32 to index
      %c44 = arith.constant 44 : index
      %305 = memref.load %arg2[%304, %c44] : memref<2x63xf32, #tpu.memory_space<smem>>
      %306 = vector.broadcast %305 : f32 to vector<8x512xf32>
      %307 = arith.subf %15, %306 : vector<8x512xf32>
      %308 = arith.mulf %299, %299 : vector<8x512xf32>
      %309 = arith.mulf %303, %303 : vector<8x512xf32>
      %310 = arith.addf %308, %309 : vector<8x512xf32>
      %311 = arith.mulf %307, %307 : vector<8x512xf32>
      %312 = arith.addf %310, %311 : vector<8x512xf32>
      %c0_63 = arith.constant 0 : index
      %c14_64 = arith.constant 14 : index
      %c0_65 = arith.constant 0 : index
      %c0_66 = arith.constant 0 : index
      %313 = vector.load %arg5[%c0_63, %c14_64, %c0_65, %c0_66] : memref<1x21x8x512xf32, #tpu.memory_space<vmem>>, vector<1x1x8x512xf32>
      %314 = vector.shape_cast %313 : vector<1x1x8x512xf32> to vector<8x512xf32>
      %315 = vector.shape_cast %312 : vector<8x512xf32> to vector<1x1x8x512xf32>
      tpu.vector_store %arg5[%c0_63, %c14_64, %c0_65, %c0_66], %315 {strides = array<i32>} : memref<1x21x8x512xf32, #tpu.memory_space<vmem>>, vector<1x1x8x512xf32>,
      %316 = arith.index_cast %arg0 : i32 to index
      %c45 = arith.constant 45 : index
      %317 = memref.load %arg2[%316, %c45] : memref<2x63xf32, #tpu.memory_space<smem>>
      %318 = vector.broadcast %317 : f32 to vector<8x512xf32>
      %319 = arith.subf %11, %318 : vector<8x512xf32>
      %320 = arith.index_cast %arg0 : i32 to index
      %c46 = arith.constant 46 : index
      %321 = memref.load %arg2[%320, %c46] : memref<2x63xf32, #tpu.memory_space<smem>>
      %322 = vector.broadcast %321 : f32 to vector<8x512xf32>
      %323 = arith.subf %13, %322 : vector<8x512xf32>
      %324 = arith.index_cast %arg0 : i32 to index
      %c47 = arith.constant 47 : index
      %325 = memref.load %arg2[%324, %c47] : memref<2x63xf32, #tpu.memory_space<smem>>
      %326 = vector.broadcast %325 : f32 to vector<8x512xf32>
      %327 = arith.subf %15, %326 : vector<8x512xf32>
      %328 = arith.mulf %319, %319 : vector<8x512xf32>
      %329 = arith.mulf %323, %323 : vector<8x512xf32>
      %330 = arith.addf %328, %329 : vector<8x512xf32>
      %331 = arith.mulf %327, %327 : vector<8x512xf32>
      %332 = arith.addf %330, %331 : vector<8x512xf32>
      %c0_67 = arith.constant 0 : index
      %c15_68 = arith.constant 15 : index
      %c0_69 = arith.constant 0 : index
      %c0_70 = arith.constant 0 : index
      %333 = vector.load %arg5[%c0_67, %c15_68, %c0_69, %c0_70] : memref<1x21x8x512xf32, #tpu.memory_space<vmem>>, vector<1x1x8x512xf32>
      %334 = vector.shape_cast %333 : vector<1x1x8x512xf32> to vector<8x512xf32>
      %335 = vector.shape_cast %332 : vector<8x512xf32> to vector<1x1x8x512xf32>
      tpu.vector_store %arg5[%c0_67, %c15_68, %c0_69, %c0_70], %335 {strides = array<i32>} : memref<1x21x8x512xf32, #tpu.memory_space<vmem>>, vector<1x1x8x512xf32>,
      %336 = arith.index_cast %arg0 : i32 to index
      %c48 = arith.constant 48 : index
      %337 = memref.load %arg2[%336, %c48] : memref<2x63xf32, #tpu.memory_space<smem>>
      %338 = vector.broadcast %337 : f32 to vector<8x512xf32>
      %339 = arith.subf %11, %338 : vector<8x512xf32>
      %340 = arith.index_cast %arg0 : i32 to index
      %c49 = arith.constant 49 : index
      %341 = memref.load %arg2[%340, %c49] : memref<2x63xf32, #tpu.memory_space<smem>>
      %342 = vector.broadcast %341 : f32 to vector<8x512xf32>
      %343 = arith.subf %13, %342 : vector<8x512xf32>
      %344 = arith.index_cast %arg0 : i32 to index
      %c50 = arith.constant 50 : index
      %345 = memref.load %arg2[%344, %c50] : memref<2x63xf32, #tpu.memory_space<smem>>
      %346 = vector.broadcast %345 : f32 to vector<8x512xf32>
      %347 = arith.subf %15, %346 : vector<8x512xf32>
      %348 = arith.mulf %339, %339 : vector<8x512xf32>
      %349 = arith.mulf %343, %343 : vector<8x512xf32>
      %350 = arith.addf %348, %349 : vector<8x512xf32>
      %351 = arith.mulf %347, %347 : vector<8x512xf32>
      %352 = arith.addf %350, %351 : vector<8x512xf32>
      %c0_71 = arith.constant 0 : index
      %c16_72 = arith.constant 16 : index
      %c0_73 = arith.constant 0 : index
      %c0_74 = arith.constant 0 : index
      %353 = vector.load %arg5[%c0_71, %c16_72, %c0_73, %c0_74] : memref<1x21x8x512xf32, #tpu.memory_space<vmem>>, vector<1x1x8x512xf32>
      %354 = vector.shape_cast %353 : vector<1x1x8x512xf32> to vector<8x512xf32>
      %355 = vector.shape_cast %352 : vector<8x512xf32> to vector<1x1x8x512xf32>
      tpu.vector_store %arg5[%c0_71, %c16_72, %c0_73, %c0_74], %355 {strides = array<i32>} : memref<1x21x8x512xf32, #tpu.memory_space<vmem>>, vector<1x1x8x512xf32>,
      %356 = arith.index_cast %arg0 : i32 to index
      %c51 = arith.constant 51 : index
      %357 = memref.load %arg2[%356, %c51] : memref<2x63xf32, #tpu.memory_space<smem>>
      %358 = vector.broadcast %357 : f32 to vector<8x512xf32>
      %359 = arith.subf %11, %358 : vector<8x512xf32>
      %360 = arith.index_cast %arg0 : i32 to index
      %c52 = arith.constant 52 : index
      %361 = memref.load %arg2[%360, %c52] : memref<2x63xf32, #tpu.memory_space<smem>>
      %362 = vector.broadcast %361 : f32 to vector<8x512xf32>
      %363 = arith.subf %13, %362 : vector<8x512xf32>
      %364 = arith.index_cast %arg0 : i32 to index
      %c53 = arith.constant 53 : index
      %365 = memref.load %arg2[%364, %c53] : memref<2x63xf32, #tpu.memory_space<smem>>
      %366 = vector.broadcast %365 : f32 to vector<8x512xf32>
      %367 = arith.subf %15, %366 : vector<8x512xf32>
      %368 = arith.mulf %359, %359 : vector<8x512xf32>
      %369 = arith.mulf %363, %363 : vector<8x512xf32>
      %370 = arith.addf %368, %369 : vector<8x512xf32>
      %371 = arith.mulf %367, %367 : vector<8x512xf32>
      %372 = arith.addf %370, %371 : vector<8x512xf32>
      %c0_75 = arith.constant 0 : index
      %c17_76 = arith.constant 17 : index
      %c0_77 = arith.constant 0 : index
      %c0_78 = arith.constant 0 : index
      %373 = vector.load %arg5[%c0_75, %c17_76, %c0_77, %c0_78] : memref<1x21x8x512xf32, #tpu.memory_space<vmem>>, vector<1x1x8x512xf32>
      %374 = vector.shape_cast %373 : vector<1x1x8x512xf32> to vector<8x512xf32>
      %375 = vector.shape_cast %372 : vector<8x512xf32> to vector<1x1x8x512xf32>
      tpu.vector_store %arg5[%c0_75, %c17_76, %c0_77, %c0_78], %375 {strides = array<i32>} : memref<1x21x8x512xf32, #tpu.memory_space<vmem>>, vector<1x1x8x512xf32>,
      %376 = arith.index_cast %arg0 : i32 to index
      %c54 = arith.constant 54 : index
      %377 = memref.load %arg2[%376, %c54] : memref<2x63xf32, #tpu.memory_space<smem>>
      %378 = vector.broadcast %377 : f32 to vector<8x512xf32>
      %379 = arith.subf %11, %378 : vector<8x512xf32>
      %380 = arith.index_cast %arg0 : i32 to index
      %c55 = arith.constant 55 : index
      %381 = memref.load %arg2[%380, %c55] : memref<2x63xf32, #tpu.memory_space<smem>>
      %382 = vector.broadcast %381 : f32 to vector<8x512xf32>
      %383 = arith.subf %13, %382 : vector<8x512xf32>
      %384 = arith.index_cast %arg0 : i32 to index
      %c56 = arith.constant 56 : index
      %385 = memref.load %arg2[%384, %c56] : memref<2x63xf32, #tpu.memory_space<smem>>
      %386 = vector.broadcast %385 : f32 to vector<8x512xf32>
      %387 = arith.subf %15, %386 : vector<8x512xf32>
      %388 = arith.mulf %379, %379 : vector<8x512xf32>
      %389 = arith.mulf %383, %383 : vector<8x512xf32>
      %390 = arith.addf %388, %389 : vector<8x512xf32>
      %391 = arith.mulf %387, %387 : vector<8x512xf32>
      %392 = arith.addf %390, %391 : vector<8x512xf32>
      %c0_79 = arith.constant 0 : index
      %c18_80 = arith.constant 18 : index
      %c0_81 = arith.constant 0 : index
      %c0_82 = arith.constant 0 : index
      %393 = vector.load %arg5[%c0_79, %c18_80, %c0_81, %c0_82] : memref<1x21x8x512xf32, #tpu.memory_space<vmem>>, vector<1x1x8x512xf32>
      %394 = vector.shape_cast %393 : vector<1x1x8x512xf32> to vector<8x512xf32>
      %395 = vector.shape_cast %392 : vector<8x512xf32> to vector<1x1x8x512xf32>
      tpu.vector_store %arg5[%c0_79, %c18_80, %c0_81, %c0_82], %395 {strides = array<i32>} : memref<1x21x8x512xf32, #tpu.memory_space<vmem>>, vector<1x1x8x512xf32>,
      %396 = arith.index_cast %arg0 : i32 to index
      %c57 = arith.constant 57 : index
      %397 = memref.load %arg2[%396, %c57] : memref<2x63xf32, #tpu.memory_space<smem>>
      %398 = vector.broadcast %397 : f32 to vector<8x512xf32>
      %399 = arith.subf %11, %398 : vector<8x512xf32>
      %400 = arith.index_cast %arg0 : i32 to index
      %c58 = arith.constant 58 : index
      %401 = memref.load %arg2[%400, %c58] : memref<2x63xf32, #tpu.memory_space<smem>>
      %402 = vector.broadcast %401 : f32 to vector<8x512xf32>
      %403 = arith.subf %13, %402 : vector<8x512xf32>
      %404 = arith.index_cast %arg0 : i32 to index
      %c59 = arith.constant 59 : index
      %405 = memref.load %arg2[%404, %c59] : memref<2x63xf32, #tpu.memory_space<smem>>
      %406 = vector.broadcast %405 : f32 to vector<8x512xf32>
      %407 = arith.subf %15, %406 : vector<8x512xf32>
      %408 = arith.mulf %399, %399 : vector<8x512xf32>
      %409 = arith.mulf %403, %403 : vector<8x512xf32>
      %410 = arith.addf %408, %409 : vector<8x512xf32>
      %411 = arith.mulf %407, %407 : vector<8x512xf32>
      %412 = arith.addf %410, %411 : vector<8x512xf32>
      %c0_83 = arith.constant 0 : index
      %c19_84 = arith.constant 19 : index
      %c0_85 = arith.constant 0 : index
      %c0_86 = arith.constant 0 : index
      %413 = vector.load %arg5[%c0_83, %c19_84, %c0_85, %c0_86] : memref<1x21x8x512xf32, #tpu.memory_space<vmem>>, vector<1x1x8x512xf32>
      %414 = vector.shape_cast %413 : vector<1x1x8x512xf32> to vector<8x512xf32>
      %415 = vector.shape_cast %412 : vector<8x512xf32> to vector<1x1x8x512xf32>
      tpu.vector_store %arg5[%c0_83, %c19_84, %c0_85, %c0_86], %415 {strides = array<i32>} : memref<1x21x8x512xf32, #tpu.memory_space<vmem>>, vector<1x1x8x512xf32>,
      %416 = arith.index_cast %arg0 : i32 to index
      %c60 = arith.constant 60 : index
      %417 = memref.load %arg2[%416, %c60] : memref<2x63xf32, #tpu.memory_space<smem>>
      %418 = vector.broadcast %417 : f32 to vector<8x512xf32>
      %419 = arith.subf %11, %418 : vector<8x512xf32>
      %420 = arith.index_cast %arg0 : i32 to index
      %c61 = arith.constant 61 : index
      %421 = memref.load %arg2[%420, %c61] : memref<2x63xf32, #tpu.memory_space<smem>>
      %422 = vector.broadcast %421 : f32 to vector<8x512xf32>
      %423 = arith.subf %13, %422 : vector<8x512xf32>
      %424 = arith.index_cast %arg0 : i32 to index
      %c62 = arith.constant 62 : index
      %425 = memref.load %arg2[%424, %c62] : memref<2x63xf32, #tpu.memory_space<smem>>
      %426 = vector.broadcast %425 : f32 to vector<8x512xf32>
      %427 = arith.subf %15, %426 : vector<8x512xf32>
      %428 = arith.mulf %419, %419 : vector<8x512xf32>
      %429 = arith.mulf %423, %423 : vector<8x512xf32>
      %430 = arith.addf %428, %429 : vector<8x512xf32>
      %431 = arith.mulf %427, %427 : vector<8x512xf32>
      %432 = arith.addf %430, %431 : vector<8x512xf32>
      %c0_87 = arith.constant 0 : index
      %c20_88 = arith.constant 20 : index
      %c0_89 = arith.constant 0 : index
      %c0_90 = arith.constant 0 : index
      %433 = vector.load %arg5[%c0_87, %c20_88, %c0_89, %c0_90] : memref<1x21x8x512xf32, #tpu.memory_space<vmem>>, vector<1x1x8x512xf32>
      %434 = vector.shape_cast %433 : vector<1x1x8x512xf32> to vector<8x512xf32>
      %435 = vector.shape_cast %432 : vector<8x512xf32> to vector<1x1x8x512xf32>
      tpu.vector_store %arg5[%c0_87, %c20_88, %c0_89, %c0_90], %435 {strides = array<i32>} : memref<1x21x8x512xf32, #tpu.memory_space<vmem>>, vector<1x1x8x512xf32>,
    } else {
    }
    return
  }
  func.func @transform_0(%arg0: i32, %arg1: i32, %arg2: memref<2x63xf32, #tpu.memory_space<smem>>, %arg3: memref<2xi32, #tpu.memory_space<smem>>) -> (i32, i32, i32, i32) {
    %c0_i32 = arith.constant 0 : i32
    %c0_i32_0 = arith.constant 0 : i32
    %c0_i32_1 = arith.constant 0 : i32
    return %arg0, %c0_i32, %arg1, %c0_i32_0 : i32, i32, i32, i32
  }
  func.func @transform_1(%arg0: i32, %arg1: i32, %arg2: memref<2x63xf32, #tpu.memory_space<smem>>, %arg3: memref<2xi32, #tpu.memory_space<smem>>) -> (i32, i32, i32, i32) {
    %c0_i32 = arith.constant 0 : i32
    %c0_i32_0 = arith.constant 0 : i32
    %c0_i32_1 = arith.constant 0 : i32
    return %arg0, %c0_i32, %arg1, %c0_i32_0 : i32, i32, i32, i32
  }
}

</mosaic_0001>

<llo_original>
// kernel: tpu_custom_call.1
$region0: #{tpu_custom_call.1}
  #allocation0 [shape = 'u32[]', space=smem, size = 0x4, offset = 0x4, fixed_abs, tag = 'smem constant byte address 0x4 - core index']
  #allocation1 [shape = 'u32[144,128]{1,0:T(1,128)}', space=vmem, size = 0x12000, scoped, tag = 'internal scratch']
  #allocation2 [shape = 's32[1]{0}', space=sflag, size = 0x4, scoped, tag = 'scoped memory for tpu_custom_call.1']
  #allocation3 [shape = 'u8[1024]{0}', space=smem, size = 0x400, scoped, tag = 'prefetched SMEM operand 0']
  #allocation4 [shape = 'u8[512]{0}', space=smem, size = 0x200, scoped, tag = 'prefetched SMEM operand 1']
  %s0 = inlined_call_operand.hbm [shape: f32[2,63], index: 0, kind: input, shape index: {}]
  %s1 = inlined_call_operand.vmem [shape: s32[2], index: 1, kind: input, shape index: {}]
  %s2 = inlined_call_operand.hbm [shape: f32[2,3,8,512], index: 2, kind: input, shape index: {}]
  %s3 = inlined_call_operand.hbm [shape: f32[2,21,8,512], index: 3, kind: output, shape index: {}]
  %s4 = sld [smem:[#allocation0]]
  $region49: #{tpu_custom_call.1} parent=0
    _
  %s6 = ssub.s32 1, %s4
  %s7 = scalar_select 0, %s6, %s4
  %9 = dma.hbm_to_smem %s0, 32, [#allocation3], [#allocation2]
  %s10 = sshll.u32 %s1, 4
  %s11 = int_to_ptr.vmem [resolvable:$true] %s10
  %13 = dma.vmem_to_smem %s11, 16, [#allocation4], [#allocation2]
  %14 = dma.done [#allocation2], 48
  %15 = sfence
  $region1: #{tpu_custom_call.1} parent=0
    #allocation5 [shape = 'u8[98304]{0}', space=vmem, size = 0x18000, scoped, tag = 'input window, operand 2']
    #allocation6 [shape = 's32[2]{0}', space=sflag, size = 0x8, scoped, tag = 'scoped memory for tpu_custom_call.1']
    #allocation7 [shape = 's32[2]{0}', space=sflag, size = 0x8, scoped, tag = 'scoped memory for tpu_custom_call.1']
    #allocation8 [shape = 'u8[688128]{0}', space=vmem, size = 0xa8000, scoped, tag = 'output window, operand 0']
    %16 = vsyncpa [#allocation6], 0
    %s17 = scalar_lea.sflag [#allocation6], 1
    %18 = vsyncpa %s17, 0
    %19 = vsyncpa [#allocation7], 0
    %s20 = scalar_lea.sflag [#allocation7], 1
    %21 = vsyncpa %s20, 0
    loop: start=0, step=1, limit=4
    $region2: #{tpu_custom_call.1} parent=1 // loop_pre_header
      _
    $region3: #{tpu_custom_call.1} parent=1 // loop_header
      %s23 = sphi 0, %s27
      %p24 = scmp.ge.s32.totalorder %s23, 4
      %s30 = sphi 0, %s42
      %s31 = sphi 0, %s38
      %s32 = sphi 0, %s30
      %s33 = sphi 0, %s31
      %s34 = sphi 0, %s32
      %s35 = sphi 0, %s33
      %s47 = sphi 0, %s49
      %s50 = sphi 0, %s47
      %s51 = sphi 0, %s50
      %s67 = sphi 0, %s51
      %s75 = sphi 0, %s77
      %s78 = sphi 0, %s75
      %s79 = sphi 0, %s78
      %s95 = sphi 0, %s79
    $region4: #{tpu_custom_call.1} parent=1 // loop_header_branch
      %26 = sbr.rel (%p24) target = $region8
    $region5: #{tpu_custom_call.1} parent=1 // loop_body
      %s28 = ssub.s32 %s23, 1
      %s29 = ssub.s32 %s23, 2
      %s36 = sadd.s32 1, %s31
      %p37 = scmp.ge.s32.totalorder %s36, 1
      %s38 = scalar_select %p37, 0, %s36
      %s39 = sadd.s32 1, %s30
      %s40 = scalar_select %p37, %s39, %s30
      %p41 = scmp.ge.s32.totalorder %s40, 2
      %s42 = scalar_select %p41, 0, %s40
      %s43 = ssub.s32 %s30, %s42
      %s44 = ssub.s32 %s31, %s38
      %s45 = sor.u32 %s43, %s44
      %p46 = scmp.eq.s32.totalorder %s45, 0
      %s48 = sadd.s32 %s47, 1
      %s49 = scalar_select %p46, %s47, %s48
      %p52 = pneg %p46
      %p53 = scmp.eq.s32.totalorder %s23, 1
      %p54 = por %p52, %p53
      %p55 = scmp.ne.s32.totalorder %s47, %s50
      %p56 = scmp.eq.s32.totalorder %s23, 0
      %p57 = por %p55, %p56
      %p58 = scmp.ne.s32.totalorder %s47, %s50
      %p59 = scmp.eq.s32.totalorder %s28, 1
      %p60 = por %p58, %p59
      %p61 = scmp.ne.s32.totalorder %s50, %s51
      %p62 = scmp.eq.s32.totalorder %s28, 0
      %p63 = por %p61, %p62
      %p64 = scmp.ne.s32.totalorder %s50, %s51
      %p65 = scmp.eq.s32.totalorder %s29, 1
      %p66 = por %p64, %p65
      %p68 = scmp.ne.s32.totalorder %s51, %s67
      %p69 = scmp.eq.s32.totalorder %s29, 0
      %p70 = por %p68, %p69
      %s71 = ssub.s32 %s30, %s42
      %s72 = ssub.s32 %s31, %s38
      %s73 = sor.u32 %s71, %s72
      %p74 = scmp.eq.s32.totalorder %s73, 0
      %s76 = sadd.s32 %s75, 1
      %s77 = scalar_select %p74, %s75, %s76
      %p80 = pneg %p74
      %p81 = scmp.eq.s32.totalorder %s23, 1
      %p82 = por %p80, %p81
      %p83 = scmp.ne.s32.totalorder %s75, %s78
      %p84 = scmp.eq.s32.totalorder %s23, 0
      %p85 = por %p83, %p84
      %p86 = scmp.ne.s32.totalorder %s75, %s78
      %p87 = scmp.eq.s32.totalorder %s28, 1
      %p88 = por %p86, %p87
      %p89 = scmp.ne.s32.totalorder %s78, %s79
      %p90 = scmp.eq.s32.totalorder %s28, 0
      %p91 = por %p89, %p90
      %p92 = scmp.ne.s32.totalorder %s78, %s79
      %p93 = scmp.eq.s32.totalorder %s29, 1
      %p94 = por %p92, %p93
      %p96 = scmp.ne.s32.totalorder %s79, %s95
      %p97 = scmp.eq.s32.totalorder %s29, 0
      %p98 = por %p96, %p97
      %p99 = scmp.le.s32.totalorder 1, %s23
      %p100 = scmp.lt.s32.totalorder %s23, 3
      %p101 = pnand %p99, %p100
      %p102 = pneg %p101
      // Predicated region
      $region9: #{tpu_custom_call.1} parent=5 // pred_check
        _
      $region10: #{tpu_custom_call.1} parent=5 // pred_check_branch
        %104 = sbr.rel (%p101) target = $region12
      $region11: #{tpu_custom_call.1} parent=5 // pred_region
        %s105 = ssub.s32 %s23, 1
      $region12: #{tpu_custom_call.1} parent=5 // pred_fallthru
        _
      %p106 = scmp.lt.s32.totalorder %s23, 2
      // Predicated region
      $region13: #{tpu_custom_call.1} parent=5 // pred_check
        %p107 = pneg %p106
      $region14: #{tpu_custom_call.1} parent=5 // pred_check_branch
        %109 = sbr.rel (%p107) target = $region16
      $region15: #{tpu_custom_call.1} parent=5 // pred_region
        // Predicated region
        $region17: #{tpu_custom_call.1} parent=15 // pred_check
          %p110 = pneg %p57
        $region18: #{tpu_custom_call.1} parent=15 // pred_check_branch
          %112 = sbr.rel (%p110) target = $region20
        $region19: #{tpu_custom_call.1} parent=15 // pred_region
          %s113 = sand.u32 %s47, 1
          %s114 = scalar_lea.sflag [#allocation6], %s113
          %s115 = sand.u32 %s47, 1
          %s116 = smul.addr %s115, 96
          %s117 = scalar_lea.vmem [#allocation5], %s116
          %s119 = ssub.s32 1536, 1536
          %120 = vsyncadd %s114, %s119
          %s121 = smul.addr %s31, 4
          %s122 = smul.addr %s30, 12
          %s123 = sadd.s32 %s121, %s122
          %s124 = smul.addr %s123, 128
          %s125 = scalar_lea.hbm %s2, %s124
          %s126 = sshll.u32 %s117, 4
          %s127 = int_to_ptr.vmem [resolvable:$true] %s126
          %132 = dma.hbm_to_vmem [thread:$0]  %s125, 1536, %s127, %s114, 512, 512, 32
        $region20: #{tpu_custom_call.1} parent=15 // pred_fallthru
          _
      $region16: #{tpu_custom_call.1} parent=5 // pred_fallthru
        _
      %p133 = scmp.le.s32.totalorder 1, %s23
      %p134 = scmp.lt.s32.totalorder %s23, 3
      %p135 = pnand %p133, %p134
      %p136 = pneg %p135
      // Predicated region
      $region21: #{tpu_custom_call.1} parent=5 // pred_check
        _
      $region22: #{tpu_custom_call.1} parent=5 // pred_check_branch
        %138 = sbr.rel (%p135) target = $region24
      $region23: #{tpu_custom_call.1} parent=5 // pred_region
        %s139 = ssub.s32 %s23, 1
        %s140 = sand.u32 %s50, 1
        %s141 = scalar_lea.sflag [#allocation6], %s140
        %s142 = sand.u32 %s50, 1
        %s143 = smul.addr %s142, 96
        %s144 = scalar_lea.vmem [#allocation5], %s143
        // Predicated region
        $region25: #{tpu_custom_call.1} parent=23 // pred_check
          %p145 = pneg %p63
        $region26: #{tpu_custom_call.1} parent=23 // pred_check_branch
          %147 = sbr.rel (%p145) target = $region28
        $region27: #{tpu_custom_call.1} parent=23 // pred_region
          %148 = dma.done %s141, 1536
        $region28: #{tpu_custom_call.1} parent=23 // pred_fallthru
          _
        %s149 = sand.u32 %s50, 1
        %s150 = scalar_lea.sflag [#allocation6], %s149
        %s151 = sand.u32 %s50, 1
        %s152 = smul.addr %s151, 96
        %s153 = scalar_lea.vmem [#allocation5], %s152
        %p154 = pneg %p63
        %p155 = pneg %p60
        %p156 = pneg %p91
        %p157 = pneg %p88
        %s158 = sand.u32 %s78, 1
        %s159 = scalar_lea.sflag [#allocation7], %s158
        %s160 = sand.u32 %s78, 1
        %s161 = smul.addr %s160, 672
        %s162 = scalar_lea.vmem [#allocation8], %s161
        %s163 = sld [smem:[#allocation4 + %s32]]
        %p164 = scmp.eq.s32.totalorder %s163, 0
        // Predicated region
        $region29: #{tpu_custom_call.1} parent=23 // pred_check
          %p165 = pneg %p164
        $region30: #{tpu_custom_call.1} parent=23 // pred_check_branch
          %167 = sbr.rel (%p165) target = $region32
        $region31: #{tpu_custom_call.1} parent=23 // pred_region
          %168 = vst [vmem:[%s162] sm:$0xff] 0.0
          %169 = vst [vmem:[%s162 + $0x8] sm:$0xff] 0.0
          %170 = vst [vmem:[%s162 + $0x10] sm:$0xff] 0.0
          %171 = vst [vmem:[%s162 + $0x18] sm:$0xff] 0.0
          %172 = vst [vmem:[%s162 + $0x20] sm:$0xff] 0.0
          %173 = vst [vmem:[%s162 + $0x28] sm:$0xff] 0.0
          %174 = vst [vmem:[%s162 + $0x30] sm:$0xff] 0.0
          %175 = vst [vmem:[%s162 + $0x38] sm:$0xff] 0.0
          %176 = vst [vmem:[%s162 + $0x40] sm:$0xff] 0.0
          %177 = vst [vmem:[%s162 + $0x48] sm:$0xff] 0.0
          %178 = vst [vmem:[%s162 + $0x50] sm:$0xff] 0.0
          %179 = vst [vmem:[%s162 + $0x58] sm:$0xff] 0.0
          %180 = vst [vmem:[%s162 + $0x60] sm:$0xff] 0.0
          %181 = vst [vmem:[%s162 + $0x68] sm:$0xff] 0.0
          %182 = vst [vmem:[%s162 + $0x70] sm:$0xff] 0.0
          %183 = vst [vmem:[%s162 + $0x78] sm:$0xff] 0.0
          %184 = vst [vmem:[%s162 + $0x80] sm:$0xff] 0.0
          %185 = vst [vmem:[%s162 + $0x88] sm:$0xff] 0.0
          %186 = vst [vmem:[%s162 + $0x90] sm:$0xff] 0.0
          %187 = vst [vmem:[%s162 + $0x98] sm:$0xff] 0.0
          %188 = vst [vmem:[%s162 + $0xa0] sm:$0xff] 0.0
          %189 = vst [vmem:[%s162 + $0xa8] sm:$0xff] 0.0
          %190 = vst [vmem:[%s162 + $0xb0] sm:$0xff] 0.0
          %191 = vst [vmem:[%s162 + $0xb8] sm:$0xff] 0.0
          %192 = vst [vmem:[%s162 + $0xc0] sm:$0xff] 0.0
          %193 = vst [vmem:[%s162 + $0xc8] sm:$0xff] 0.0
          %194 = vst [vmem:[%s162 + $0xd0] sm:$0xff] 0.0
          %195 = vst [vmem:[%s162 + $0xd8] sm:$0xff] 0.0
          %196 = vst [vmem:[%s162 + $0xe0] sm:$0xff] 0.0
          %197 = vst [vmem:[%s162 + $0xe8] sm:$0xff] 0.0
          %198 = vst [vmem:[%s162 + $0xf0] sm:$0xff] 0.0
          %199 = vst [vmem:[%s162 + $0xf8] sm:$0xff] 0.0
          %200 = vst [vmem:[%s162 + $0x100] sm:$0xff] 0.0
          %201 = vst [vmem:[%s162 + $0x108] sm:$0xff] 0.0
          %202 = vst [vmem:[%s162 + $0x110] sm:$0xff] 0.0
          %203 = vst [vmem:[%s162 + $0x118] sm:$0xff] 0.0
          %204 = vst [vmem:[%s162 + $0x120] sm:$0xff] 0.0
          %205 = vst [vmem:[%s162 + $0x128] sm:$0xff] 0.0
          %206 = vst [vmem:[%s162 + $0x130] sm:$0xff] 0.0
          %207 = vst [vmem:[%s162 + $0x138] sm:$0xff] 0.0
          %208 = vst [vmem:[%s162 + $0x140] sm:$0xff] 0.0
          %209 = vst [vmem:[%s162 + $0x148] sm:$0xff] 0.0
          %210 = vst [vmem:[%s162 + $0x150] sm:$0xff] 0.0
          %211 = vst [vmem:[%s162 + $0x158] sm:$0xff] 0.0
          %212 = vst [vmem:[%s162 + $0x160] sm:$0xff] 0.0
          %213 = vst [vmem:[%s162 + $0x168] sm:$0xff] 0.0
          %214 = vst [vmem:[%s162 + $0x170] sm:$0xff] 0.0
          %215 = vst [vmem:[%s162 + $0x178] sm:$0xff] 0.0
          %216 = vst [vmem:[%s162 + $0x180] sm:$0xff] 0.0
          %217 = vst [vmem:[%s162 + $0x188] sm:$0xff] 0.0
          %218 = vst [vmem:[%s162 + $0x190] sm:$0xff] 0.0
          %219 = vst [vmem:[%s162 + $0x198] sm:$0xff] 0.0
          %220 = vst [vmem:[%s162 + $0x1a0] sm:$0xff] 0.0
          %221 = vst [vmem:[%s162 + $0x1a8] sm:$0xff] 0.0
          %222 = vst [vmem:[%s162 + $0x1b0] sm:$0xff] 0.0
          %223 = vst [vmem:[%s162 + $0x1b8] sm:$0xff] 0.0
          %224 = vst [vmem:[%s162 + $0x1c0] sm:$0xff] 0.0
          %225 = vst [vmem:[%s162 + $0x1c8] sm:$0xff] 0.0
          %226 = vst [vmem:[%s162 + $0x1d0] sm:$0xff] 0.0
          %227 = vst [vmem:[%s162 + $0x1d8] sm:$0xff] 0.0
          %228 = vst [vmem:[%s162 + $0x1e0] sm:$0xff] 0.0
          %229 = vst [vmem:[%s162 + $0x1e8] sm:$0xff] 0.0
          %230 = vst [vmem:[%s162 + $0x1f0] sm:$0xff] 0.0
          %231 = vst [vmem:[%s162 + $0x1f8] sm:$0xff] 0.0
          %232 = vst [vmem:[%s162 + $0x200] sm:$0xff] 0.0
          %233 = vst [vmem:[%s162 + $0x208] sm:$0xff] 0.0
          %234 = vst [vmem:[%s162 + $0x210] sm:$0xff] 0.0
          %235 = vst [vmem:[%s162 + $0x218] sm:$0xff] 0.0
          %236 = vst [vmem:[%s162 + $0x220] sm:$0xff] 0.0
          %237 = vst [vmem:[%s162 + $0x228] sm:$0xff] 0.0
          %238 = vst [vmem:[%s162 + $0x230] sm:$0xff] 0.0
          %239 = vst [vmem:[%s162 + $0x238] sm:$0xff] 0.0
          %240 = vst [vmem:[%s162 + $0x240] sm:$0xff] 0.0
          %241 = vst [vmem:[%s162 + $0x248] sm:$0xff] 0.0
          %242 = vst [vmem:[%s162 + $0x250] sm:$0xff] 0.0
          %243 = vst [vmem:[%s162 + $0x258] sm:$0xff] 0.0
          %244 = vst [vmem:[%s162 + $0x260] sm:$0xff] 0.0
          %245 = vst [vmem:[%s162 + $0x268] sm:$0xff] 0.0
          %246 = vst [vmem:[%s162 + $0x270] sm:$0xff] 0.0
          %247 = vst [vmem:[%s162 + $0x278] sm:$0xff] 0.0
          %248 = vst [vmem:[%s162 + $0x280] sm:$0xff] 0.0
          %249 = vst [vmem:[%s162 + $0x288] sm:$0xff] 0.0
          %250 = vst [vmem:[%s162 + $0x290] sm:$0xff] 0.0
          %251 = vst [vmem:[%s162 + $0x298] sm:$0xff] 0.0
        $region32: #{tpu_custom_call.1} parent=23 // pred_fallthru
          _
        %p252 = scmp.ne.s32.totalorder %s163, 0
        // Predicated region
        $region33: #{tpu_custom_call.1} parent=23 // pred_check
          %p253 = pneg %p252
        $region34: #{tpu_custom_call.1} parent=23 // pred_check_branch
          %255 = sbr.rel (%p253) target = $region36
        $region35: #{tpu_custom_call.1} parent=23 // pred_region
          %v256 = vld [vmem:[%s144] sm:$0xff]
          %v257 = vld [vmem:[%s144 + $0x8] sm:$0xff]
          %v258 = vld [vmem:[%s144 + $0x10] sm:$0xff]
          %v259 = vld [vmem:[%s144 + $0x18] sm:$0xff]
          %v260 = vld [vmem:[%s144 + $0x20] sm:$0xff]
          %v261 = vld [vmem:[%s144 + $0x28] sm:$0xff]
          %v262 = vld [vmem:[%s144 + $0x30] sm:$0xff]
          %v263 = vld [vmem:[%s144 + $0x38] sm:$0xff]
          %v264 = vld [vmem:[%s144 + $0x40] sm:$0xff]
          %v265 = vld [vmem:[%s144 + $0x48] sm:$0xff]
          %v266 = vld [vmem:[%s144 + $0x50] sm:$0xff]
          %v267 = vld [vmem:[%s144 + $0x58] sm:$0xff]
          %s268 = smul.u32 %s32, 128
          %s269 = sld [smem:[#allocation3 + %s268]]
          %v270 = vstv %s269
          %v271 = vsub.f32 %v256, %v270
          %v272 = vsub.f32 %v257, %v270
          %v273 = vsub.f32 %v258, %v270
          %v274 = vsub.f32 %v259, %v270
          %s275 = sadd.s32 %s268, 1
          %s276 = sld [smem:[#allocation3 + %s275]]
          %v277 = vstv %s276
          %v278 = vsub.f32 %v260, %v277
          %v279 = vsub.f32 %v261, %v277
          %v280 = vsub.f32 %v262, %v277
          %v281 = vsub.f32 %v263, %v277
          %s282 = sadd.s32 %s268, 2
          %s283 = sld [smem:[#allocation3 + %s282]]
          %v284 = vstv %s283
          %v285 = vsub.f32 %v264, %v284
          %v286 = vsub.f32 %v265, %v284
          %v287 = vsub.f32 %v266, %v284
          %v288 = vsub.f32 %v267, %v284
          %v289 = vmul.f32 %v271, %v271
          %v290 = vmul.f32 %v272, %v272
          %v291 = vmul.f32 %v273, %v273
          %v292 = vmul.f32 %v274, %v274
          %v293 = vmul.f32 %v278, %v278
          %v294 = vmul.f32 %v279, %v279
          %v295 = vmul.f32 %v280, %v280
          %v296 = vmul.f32 %v281, %v281
          %v297 = vadd.f32 %v289, %v293
          %v298 = vadd.f32 %v290, %v294
          %v299 = vadd.f32 %v291, %v295
          %v300 = vadd.f32 %v292, %v296
          %v301 = vmul.f32 %v285, %v285
          %v302 = vmul.f32 %v286, %v286
          %v303 = vmul.f32 %v287, %v287
          %v304 = vmul.f32 %v288, %v288
          %v305 = vadd.f32 %v297, %v301
          %v306 = vadd.f32 %v298, %v302
          %v307 = vadd.f32 %v299, %v303
          %v308 = vadd.f32 %v300, %v304
          %309 = vst [vmem:[%s162] sm:$0xff] %v305
          %310 = vst [vmem:[%s162 + $0x8] sm:$0xff] %v306
          %311 = vst [vmem:[%s162 + $0x10] sm:$0xff] %v307
          %312 = vst [vmem:[%s162 + $0x18] sm:$0xff] %v308
          %s313 = sadd.s32 %s268, 3
          %s314 = sld [smem:[#allocation3 + %s313]]
          %v315 = vstv %s314
          %v316 = vsub.f32 %v256, %v315
          %v317 = vsub.f32 %v257, %v315
          %v318 = vsub.f32 %v258, %v315
          %v319 = vsub.f32 %v259, %v315
          %s320 = sadd.s32 %s268, 4
          %s321 = sld [smem:[#allocation3 + %s320]]
          %v322 = vstv %s321
          %v323 = vsub.f32 %v260, %v322
          %v324 = vsub.f32 %v261, %v322
          %v325 = vsub.f32 %v262, %v322
          %v326 = vsub.f32 %v263, %v322
          %s327 = sadd.s32 %s268, 5
          %s328 = sld [smem:[#allocation3 + %s327]]
          %v329 = vstv %s328
          %v330 = vsub.f32 %v264, %v329
          %v331 = vsub.f32 %v265, %v329
          %v332 = vsub.f32 %v266, %v329
          %v333 = vsub.f32 %v267, %v329
          %v334 = vmul.f32 %v316, %v316
          %v335 = vmul.f32 %v317, %v317
          %v336 = vmul.f32 %v318, %v318
          %v337 = vmul.f32 %v319, %v319
          %v338 = vmul.f32 %v323, %v323
          %v339 = vmul.f32 %v324, %v324
          %v340 = vmul.f32 %v325, %v325
          %v341 = vmul.f32 %v326, %v326
          %v342 = vadd.f32 %v334, %v338
          %v343 = vadd.f32 %v335, %v339
          %v344 = vadd.f32 %v336, %v340
          %v345 = vadd.f32 %v337, %v341
          %v346 = vmul.f32 %v330, %v330
          %v347 = vmul.f32 %v331, %v331
          %v348 = vmul.f32 %v332, %v332
          %v349 = vmul.f32 %v333, %v333
          %v350 = vadd.f32 %v342, %v346
          %v351 = vadd.f32 %v343, %v347
          %v352 = vadd.f32 %v344, %v348
          %v353 = vadd.f32 %v345, %v349
          %s354 = scalar_lea.vmem %s162, 32 [#allocation8]
          %355 = vst [vmem:[%s354] sm:$0xff] %v350
          %356 = vst [vmem:[%s354 + $0x8] sm:$0xff] %v351
          %357 = vst [vmem:[%s354 + $0x10] sm:$0xff] %v352
          %358 = vst [vmem:[%s354 + $0x18] sm:$0xff] %v353
          %s359 = sadd.s32 %s268, 6
          %s360 = sld [smem:[#allocation3 + %s359]]
          %v361 = vstv %s360
          %v362 = vsub.f32 %v256, %v361
          %v363 = vsub.f32 %v257, %v361
          %v364 = vsub.f32 %v258, %v361
          %v365 = vsub.f32 %v259, %v361
          %s366 = sadd.s32 %s268, 7
          %s367 = sld [smem:[#allocation3 + %s366]]
          %v368 = vstv %s367
          %v369 = vsub.f32 %v260, %v368
          %v370 = vsub.f32 %v261, %v368
          %v371 = vsub.f32 %v262, %v368
          %v372 = vsub.f32 %v263, %v368
          %s373 = sadd.s32 %s268, 8
          %s374 = sld [smem:[#allocation3 + %s373]]
          %v375 = vstv %s374
          %v376 = vsub.f32 %v264, %v375
          %v377 = vsub.f32 %v265, %v375
          %v378 = vsub.f32 %v266, %v375
          %v379 = vsub.f32 %v267, %v375
          %v380 = vmul.f32 %v362, %v362
          %v381 = vmul.f32 %v363, %v363
          %v382 = vmul.f32 %v364, %v364
          %v383 = vmul.f32 %v365, %v365
          %v384 = vmul.f32 %v369, %v369
          %v385 = vmul.f32 %v370, %v370
          %v386 = vmul.f32 %v371, %v371
          %v387 = vmul.f32 %v372, %v372
          %v388 = vadd.f32 %v380, %v384
          %v389 = vadd.f32 %v381, %v385
          %v390 = vadd.f32 %v382, %v386
          %v391 = vadd.f32 %v383, %v387
          %v392 = vmul.f32 %v376, %v376
          %v393 = vmul.f32 %v377, %v377
          %v394 = vmul.f32 %v378, %v378
          %v395 = vmul.f32 %v379, %v379
          %v396 = vadd.f32 %v388, %v392
          %v397 = vadd.f32 %v389, %v393
          %v398 = vadd.f32 %v390, %v394
          %v399 = vadd.f32 %v391, %v395
          %s400 = scalar_lea.vmem %s162, 64 [#allocation8]
          %401 = vst [vmem:[%s400] sm:$0xff] %v396
          %402 = vst [vmem:[%s400 + $0x8] sm:$0xff] %v397
          %403 = vst [vmem:[%s400 + $0x10] sm:$0xff] %v398
          %404 = vst [vmem:[%s400 + $0x18] sm:$0xff] %v399
          %s405 = sadd.s32 %s268, 9
          %s406 = sld [smem:[#allocation3 + %s405]]
          %v407 = vstv %s406
          %v408 = vsub.f32 %v256, %v407
          %v409 = vsub.f32 %v257, %v407
          %v410 = vsub.f32 %v258, %v407
          %v411 = vsub.f32 %v259, %v407
          %s412 = sadd.s32 %s268, 10
          %s413 = sld [smem:[#allocation3 + %s412]]
          %v414 = vstv %s413
          %v415 = vsub.f32 %v260, %v414
          %v416 = vsub.f32 %v261, %v414
          %v417 = vsub.f32 %v262, %v414
          %v418 = vsub.f32 %v263, %v414
          %s419 = sadd.s32 %s268, 11
          %s420 = sld [smem:[#allocation3 + %s419]]
          %v421 = vstv %s420
          %v422 = vsub.f32 %v264, %v421
          %v423 = vsub.f32 %v265, %v421
          %v424 = vsub.f32 %v266, %v421
          %v425 = vsub.f32 %v267, %v421
          %v426 = vmul.f32 %v408, %v408
          %v427 = vmul.f32 %v409, %v409
          %v428 = vmul.f32 %v410, %v410
          %v429 = vmul.f32 %v411, %v411
          %v430 = vmul.f32 %v415, %v415
          %v431 = vmul.f32 %v416, %v416
          %v432 = vmul.f32 %v417, %v417
          %v433 = vmul.f32 %v418, %v418
          %v434 = vadd.f32 %v426, %v430
          %v435 = vadd.f32 %v427, %v431
          %v436 = vadd.f32 %v428, %v432
          %v437 = vadd.f32 %v429, %v433
          %v438 = vmul.f32 %v422, %v422
          %v439 = vmul.f32 %v423, %v423
          %v440 = vmul.f32 %v424, %v424
          %v441 = vmul.f32 %v425, %v425
          %v442 = vadd.f32 %v434, %v438
          %v443 = vadd.f32 %v435, %v439
          %v444 = vadd.f32 %v436, %v440
          %v445 = vadd.f32 %v437, %v441
          %s446 = scalar_lea.vmem %s162, 96 [#allocation8]
          %447 = vst [vmem:[%s446] sm:$0xff] %v442
          %448 = vst [vmem:[%s446 + $0x8] sm:$0xff] %v443
          %449 = vst [vmem:[%s446 + $0x10] sm:$0xff] %v444
          %450 = vst [vmem:[%s446 + $0x18] sm:$0xff] %v445
          %s451 = sadd.s32 %s268, 12
          %s452 = sld [smem:[#allocation3 + %s451]]
          %v453 = vstv %s452
          %v454 = vsub.f32 %v256, %v453
          %v455 = vsub.f32 %v257, %v453
          %v456 = vsub.f32 %v258, %v453
          %v457 = vsub.f32 %v259, %v453
          %s458 = sadd.s32 %s268, 13
          %s459 = sld [smem:[#allocation3 + %s458]]
          %v460 = vstv %s459
          %v461 = vsub.f32 %v260, %v460
          %v462 = vsub.f32 %v261, %v460
          %v463 = vsub.f32 %v262, %v460
          %v464 = vsub.f32 %v263, %v460
          %s465 = sadd.s32 %s268, 14
          %s466 = sld [smem:[#allocation3 + %s465]]
          %v467 = vstv %s466
          %v468 = vsub.f32 %v264, %v467
          %v469 = vsub.f32 %v265, %v467
          %v470 = vsub.f32 %v266, %v467
          %v471 = vsub.f32 %v267, %v467
          %v472 = vmul.f32 %v454, %v454
          %v473 = vmul.f32 %v455, %v455
          %v474 = vmul.f32 %v456, %v456
          %v475 = vmul.f32 %v457, %v457
          %v476 = vmul.f32 %v461, %v461
          %v477 = vmul.f32 %v462, %v462
          %v478 = vmul.f32 %v463, %v463
          %v479 = vmul.f32 %v464, %v464
          %v480 = vadd.f32 %v472, %v476
          %v481 = vadd.f32 %v473, %v477
          %v482 = vadd.f32 %v474, %v478
          %v483 = vadd.f32 %v475, %v479
          %v484 = vmul.f32 %v468, %v468
          %v485 = vmul.f32 %v469, %v469
          %v486 = vmul.f32 %v470, %v470
          %v487 = vmul.f32 %v471, %v471
          %v488 = vadd.f32 %v480, %v484
          %v489 = vadd.f32 %v481, %v485
          %v490 = vadd.f32 %v482, %v486
          %v491 = vadd.f32 %v483, %v487
          %s492 = scalar_lea.vmem %s162, 128 [#allocation8]
          %493 = vst [vmem:[%s492] sm:$0xff] %v488
          %494 = vst [vmem:[%s492 + $0x8] sm:$0xff] %v489
          %495 = vst [vmem:[%s492 + $0x10] sm:$0xff] %v490
          %496 = vst [vmem:[%s492 + $0x18] sm:$0xff] %v491
          %s497 = sadd.s32 %s268, 15
          %s498 = sld [smem:[#allocation3 + %s497]]
          %v499 = vstv %s498
          %v500 = vsub.f32 %v256, %v499
          %v501 = vsub.f32 %v257, %v499
          %v502 = vsub.f32 %v258, %v499
          %v503 = vsub.f32 %v259, %v499
          %s504 = sadd.s32 %s268, 16
          %s505 = sld [smem:[#allocation3 + %s504]]
          %v506 = vstv %s505
          %v507 = vsub.f32 %v260, %v506
          %v508 = vsub.f32 %v261, %v506
          %v509 = vsub.f32 %v262, %v506
          %v510 = vsub.f32 %v263, %v506
          %s511 = sadd.s32 %s268, 17
          %s512 = sld [smem:[#allocation3 + %s511]]
          %v513 = vstv %s512
          %v514 = vsub.f32 %v264, %v513
          %v515 = vsub.f32 %v265, %v513
          %v516 = vsub.f32 %v266, %v513
          %v517 = vsub.f32 %v267, %v513
          %v518 = vmul.f32 %v500, %v500
          %v519 = vmul.f32 %v501, %v501
          %v520 = vmul.f32 %v502, %v502
          %v521 = vmul.f32 %v503, %v503
          %v522 = vmul.f32 %v507, %v507
          %v523 = vmul.f32 %v508, %v508
          %v524 = vmul.f32 %v509, %v509
          %v525 = vmul.f32 %v510, %v510
          %v526 = vadd.f32 %v518, %v522
          %v527 = vadd.f32 %v519, %v523
          %v528 = vadd.f32 %v520, %v524
          %v529 = vadd.f32 %v521, %v525
          %v530 = vmul.f32 %v514, %v514
          %v531 = vmul.f32 %v515, %v515
          %v532 = vmul.f32 %v516, %v516
          %v533 = vmul.f32 %v517, %v517
          %v534 = vadd.f32 %v526, %v530
          %v535 = vadd.f32 %v527, %v531
          %v536 = vadd.f32 %v528, %v532
          %v537 = vadd.f32 %v529, %v533
          %s538 = scalar_lea.vmem %s162, 160 [#allocation8]
          %539 = vst [vmem:[%s538] sm:$0xff] %v534
          %540 = vst [vmem:[%s538 + $0x8] sm:$0xff] %v535
          %541 = vst [vmem:[%s538 + $0x10] sm:$0xff] %v536
          %542 = vst [vmem:[%s538 + $0x18] sm:$0xff] %v537
          %s543 = sadd.s32 %s268, 18
          %s544 = sld [smem:[#allocation3 + %s543]]
          %v545 = vstv %s544
          %v546 = vsub.f32 %v256, %v545
          %v547 = vsub.f32 %v257, %v545
          %v548 = vsub.f32 %v258, %v545
          %v549 = vsub.f32 %v259, %v545
          %s550 = sadd.s32 %s268, 19
          %s551 = sld [smem:[#allocation3 + %s550]]
          %v552 = vstv %s551
          %v553 = vsub.f32 %v260, %v552
          %v554 = vsub.f32 %v261, %v552
          %v555 = vsub.f32 %v262, %v552
          %v556 = vsub.f32 %v263, %v552
          %s557 = sadd.s32 %s268, 20
          %s558 = sld [smem:[#allocation3 + %s557]]
          %v559 = vstv %s558
          %v560 = vsub.f32 %v264, %v559
          %v561 = vsub.f32 %v265, %v559
          %v562 = vsub.f32 %v266, %v559
          %v563 = vsub.f32 %v267, %v559
          %v564 = vmul.f32 %v546, %v546
          %v565 = vmul.f32 %v547, %v547
          %v566 = vmul.f32 %v548, %v548
          %v567 = vmul.f32 %v549, %v549
          %v568 = vmul.f32 %v553, %v553
          %v569 = vmul.f32 %v554, %v554
          %v570 = vmul.f32 %v555, %v555
          %v571 = vmul.f32 %v556, %v556
          %v572 = vadd.f32 %v564, %v568
          %v573 = vadd.f32 %v565, %v569
          %v574 = vadd.f32 %v566, %v570
          %v575 = vadd.f32 %v567, %v571
          %v576 = vmul.f32 %v560, %v560
          %v577 = vmul.f32 %v561, %v561
          %v578 = vmul.f32 %v562, %v562
          %v579 = vmul.f32 %v563, %v563
          %v580 = vadd.f32 %v572, %v576
          %v581 = vadd.f32 %v573, %v577
          %v582 = vadd.f32 %v574, %v578
          %v583 = vadd.f32 %v575, %v579
          %s584 = scalar_lea.vmem %s162, 192 [#allocation8]
          %585 = vst [vmem:[%s584] sm:$0xff] %v580
          %586 = vst [vmem:[%s584 + $0x8] sm:$0xff] %v581
          %587 = vst [vmem:[%s584 + $0x10] sm:$0xff] %v582
          %588 = vst [vmem:[%s584 + $0x18] sm:$0xff] %v583
          %s589 = sadd.s32 %s268, 21
          %s590 = sld [smem:[#allocation3 + %s589]]
          %v591 = vstv %s590
          %v592 = vsub.f32 %v256, %v591
          %v593 = vsub.f32 %v257, %v591
          %v594 = vsub.f32 %v258, %v591
          %v595 = vsub.f32 %v259, %v591
          %s596 = sadd.s32 %s268, 22
          %s597 = sld [smem:[#allocation3 + %s596]]
          %v598 = vstv %s597
          %v599 = vsub.f32 %v260, %v598
          %v600 = vsub.f32 %v261, %v598
          %v601 = vsub.f32 %v262, %v598
          %v602 = vsub.f32 %v263, %v598
          %s603 = sadd.s32 %s268, 23
          %s604 = sld [smem:[#allocation3 + %s603]]
          %v605 = vstv %s604
          %v606 = vsub.f32 %v264, %v605
          %v607 = vsub.f32 %v265, %v605
          %v608 = vsub.f32 %v266, %v605
          %v609 = vsub.f32 %v267, %v605
          %v610 = vmul.f32 %v592, %v592
          %v611 = vmul.f32 %v593, %v593
          %v612 = vmul.f32 %v594, %v594
          %v613 = vmul.f32 %v595, %v595
          %v614 = vmul.f32 %v599, %v599
          %v615 = vmul.f32 %v600, %v600
          %v616 = vmul.f32 %v601, %v601
          %v617 = vmul.f32 %v602, %v602
          %v618 = vadd.f32 %v610, %v614
          %v619 = vadd.f32 %v611, %v615
          %v620 = vadd.f32 %v612, %v616
          %v621 = vadd.f32 %v613, %v617
          %v622 = vmul.f32 %v606, %v606
          %v623 = vmul.f32 %v607, %v607
          %v624 = vmul.f32 %v608, %v608
          %v625 = vmul.f32 %v609, %v609
          %v626 = vadd.f32 %v618, %v622
          %v627 = vadd.f32 %v619, %v623
          %v628 = vadd.f32 %v620, %v624
          %v629 = vadd.f32 %v621, %v625
          %s630 = scalar_lea.vmem %s162, 224 [#allocation8]
          %631 = vst [vmem:[%s630] sm:$0xff] %v626
          %632 = vst [vmem:[%s630 + $0x8] sm:$0xff] %v627
          %633 = vst [vmem:[%s630 + $0x10] sm:$0xff] %v628
          %634 = vst [vmem:[%s630 + $0x18] sm:$0xff] %v629
          %s635 = sadd.s32 %s268, 24
          %s636 = sld [smem:[#allocation3 + %s635]]
          %v637 = vstv %s636
          %v638 = vsub.f32 %v256, %v637
          %v639 = vsub.f32 %v257, %v637
          %v640 = vsub.f32 %v258, %v637
          %v641 = vsub.f32 %v259, %v637
          %s642 = sadd.s32 %s268, 25
          %s643 = sld [smem:[#allocation3 + %s642]]
          %v644 = vstv %s643
          %v645 = vsub.f32 %v260, %v644
          %v646 = vsub.f32 %v261, %v644
          %v647 = vsub.f32 %v262, %v644
          %v648 = vsub.f32 %v263, %v644
          %s649 = sadd.s32 %s268, 26
          %s650 = sld [smem:[#allocation3 + %s649]]
          %v651 = vstv %s650
          %v652 = vsub.f32 %v264, %v651
          %v653 = vsub.f32 %v265, %v651
          %v654 = vsub.f32 %v266, %v651
          %v655 = vsub.f32 %v267, %v651
          %v656 = vmul.f32 %v638, %v638
          %v657 = vmul.f32 %v639, %v639
          %v658 = vmul.f32 %v640, %v640
          %v659 = vmul.f32 %v641, %v641
          %v660 = vmul.f32 %v645, %v645
          %v661 = vmul.f32 %v646, %v646
          %v662 = vmul.f32 %v647, %v647
          %v663 = vmul.f32 %v648, %v648
          %v664 = vadd.f32 %v656, %v660
          %v665 = vadd.f32 %v657, %v661
          %v666 = vadd.f32 %v658, %v662
          %v667 = vadd.f32 %v659, %v663
          %v668 = vmul.f32 %v652, %v652
          %v669 = vmul.f32 %v653, %v653
          %v670 = vmul.f32 %v654, %v654
          %v671 = vmul.f32 %v655, %v655
          %v672 = vadd.f32 %v664, %v668
          %v673 = vadd.f32 %v665, %v669
          %v674 = vadd.f32 %v666, %v670
          %v675 = vadd.f32 %v667, %v671
          %s676 = scalar_lea.vmem %s162, 256 [#allocation8]
          %677 = vst [vmem:[%s676] sm:$0xff] %v672
          %678 = vst [vmem:[%s676 + $0x8] sm:$0xff] %v673
          %679 = vst [vmem:[%s676 + $0x10] sm:$0xff] %v674
          %680 = vst [vmem:[%s676 + $0x18] sm:$0xff] %v675
          %s681 = sadd.s32 %s268, 27
          %s682 = sld [smem:[#allocation3 + %s681]]
          %v683 = vstv %s682
          %v684 = vsub.f32 %v256, %v683
          %v685 = vsub.f32 %v257, %v683
          %v686 = vsub.f32 %v258, %v683
          %v687 = vsub.f32 %v259, %v683
          %s688 = sadd.s32 %s268, 28
          %s689 = sld [smem:[#allocation3 + %s688]]
          %v690 = vstv %s689
          %v691 = vsub.f32 %v260, %v690
          %v692 = vsub.f32 %v261, %v690
          %v693 = vsub.f32 %v262, %v690
          %v694 = vsub.f32 %v263, %v690
          %s695 = sadd.s32 %s268, 29
          %s696 = sld [smem:[#allocation3 + %s695]]
          %v697 = vstv %s696
          %v698 = vsub.f32 %v264, %v697
          %v699 = vsub.f32 %v265, %v697
          %v700 = vsub.f32 %v266, %v697
          %v701 = vsub.f32 %v267, %v697
          %v702 = vmul.f32 %v684, %v684
          %v703 = vmul.f32 %v685, %v685
          %v704 = vmul.f32 %v686, %v686
          %v705 = vmul.f32 %v687, %v687
          %v706 = vmul.f32 %v691, %v691
          %v707 = vmul.f32 %v692, %v692
          %v708 = vmul.f32 %v693, %v693
          %v709 = vmul.f32 %v694, %v694
          %v710 = vadd.f32 %v702, %v706
          %v711 = vadd.f32 %v703, %v707
          %v712 = vadd.f32 %v704, %v708
          %v713 = vadd.f32 %v705, %v709
          %v714 = vmul.f32 %v698, %v698
          %v715 = vmul.f32 %v699, %v699
          %v716 = vmul.f32 %v700, %v700
          %v717 = vmul.f32 %v701, %v701
          %v718 = vadd.f32 %v710, %v714
          %v719 = vadd.f32 %v711, %v715
          %v720 = vadd.f32 %v712, %v716
          %v721 = vadd.f32 %v713, %v717
          %s722 = scalar_lea.vmem %s162, 288 [#allocation8]
          %723 = vst [vmem:[%s722] sm:$0xff] %v718
          %724 = vst [vmem:[%s722 + $0x8] sm:$0xff] %v719
          %725 = vst [vmem:[%s722 + $0x10] sm:$0xff] %v720
          %726 = vst [vmem:[%s722 + $0x18] sm:$0xff] %v721
          %s727 = sadd.s32 %s268, 30
          %s728 = sld [smem:[#allocation3 + %s727]]
          %v729 = vstv %s728
          %v730 = vsub.f32 %v256, %v729
          %v731 = vsub.f32 %v257, %v729
          %v732 = vsub.f32 %v258, %v729
          %v733 = vsub.f32 %v259, %v729
          %s734 = sadd.s32 %s268, 31
          %s735 = sld [smem:[#allocation3 + %s734]]
          %v736 = vstv %s735
          %v737 = vsub.f32 %v260, %v736
          %v738 = vsub.f32 %v261, %v736
          %v739 = vsub.f32 %v262, %v736
          %v740 = vsub.f32 %v263, %v736
          %s741 = sadd.s32 %s268, 32
          %s742 = sld [smem:[#allocation3 + %s741]]
          %v743 = vstv %s742
          %v744 = vsub.f32 %v264, %v743
          %v745 = vsub.f32 %v265, %v743
          %v746 = vsub.f32 %v266, %v743
          %v747 = vsub.f32 %v267, %v743
          %v748 = vmul.f32 %v730, %v730
          %v749 = vmul.f32 %v731, %v731
          %v750 = vmul.f32 %v732, %v732
          %v751 = vmul.f32 %v733, %v733
          %v752 = vmul.f32 %v737, %v737
          %v753 = vmul.f32 %v738, %v738
          %v754 = vmul.f32 %v739, %v739
          %v755 = vmul.f32 %v740, %v740
          %v756 = vadd.f32 %v748, %v752
          %v757 = vadd.f32 %v749, %v753
          %v758 = vadd.f32 %v750, %v754
          %v759 = vadd.f32 %v751, %v755
          %v760 = vmul.f32 %v744, %v744
          %v761 = vmul.f32 %v745, %v745
          %v762 = vmul.f32 %v746, %v746
          %v763 = vmul.f32 %v747, %v747
          %v764 = vadd.f32 %v756, %v760
          %v765 = vadd.f32 %v757, %v761
          %v766 = vadd.f32 %v758, %v762
          %v767 = vadd.f32 %v759, %v763
          %s768 = scalar_lea.vmem %s162, 320 [#allocation8]
          %769 = vst [vmem:[%s768] sm:$0xff] %v764
          %770 = vst [vmem:[%s768 + $0x8] sm:$0xff] %v765
          %771 = vst [vmem:[%s768 + $0x10] sm:$0xff] %v766
          %772 = vst [vmem:[%s768 + $0x18] sm:$0xff] %v767
          %s773 = sadd.s32 %s268, 33
          %s774 = sld [smem:[#allocation3 + %s773]]
          %v775 = vstv %s774
          %v776 = vsub.f32 %v256, %v775
          %v777 = vsub.f32 %v257, %v775
          %v778 = vsub.f32 %v258, %v775
          %v779 = vsub.f32 %v259, %v775
          %s780 = sadd.s32 %s268, 34
          %s781 = sld [smem:[#allocation3 + %s780]]
          %v782 = vstv %s781
          %v783 = vsub.f32 %v260, %v782
          %v784 = vsub.f32 %v261, %v782
          %v785 = vsub.f32 %v262, %v782
          %v786 = vsub.f32 %v263, %v782
          %s787 = sadd.s32 %s268, 35
          %s788 = sld [smem:[#allocation3 + %s787]]
          %v789 = vstv %s788
          %v790 = vsub.f32 %v264, %v789
          %v791 = vsub.f32 %v265, %v789
          %v792 = vsub.f32 %v266, %v789
          %v793 = vsub.f32 %v267, %v789
          %v794 = vmul.f32 %v776, %v776
          %v795 = vmul.f32 %v777, %v777
          %v796 = vmul.f32 %v778, %v778
          %v797 = vmul.f32 %v779, %v779
          %v798 = vmul.f32 %v783, %v783
          %v799 = vmul.f32 %v784, %v784
          %v800 = vmul.f32 %v785, %v785
          %v801 = vmul.f32 %v786, %v786
          %v802 = vadd.f32 %v794, %v798
          %v803 = vadd.f32 %v795, %v799
          %v804 = vadd.f32 %v796, %v800
          %v805 = vadd.f32 %v797, %v801
          %v806 = vmul.f32 %v790, %v790
          %v807 = vmul.f32 %v791, %v791
          %v808 = vmul.f32 %v792, %v792
          %v809 = vmul.f32 %v793, %v793
          %v810 = vadd.f32 %v802, %v806
          %v811 = vadd.f32 %v803, %v807
          %v812 = vadd.f32 %v804, %v808
          %v813 = vadd.f32 %v805, %v809
          %s814 = scalar_lea.vmem %s162, 352 [#allocation8]
          %815 = vst [vmem:[%s814] sm:$0xff] %v810
          %816 = vst [vmem:[%s814 + $0x8] sm:$0xff] %v811
          %817 = vst [vmem:[%s814 + $0x10] sm:$0xff] %v812
          %818 = vst [vmem:[%s814 + $0x18] sm:$0xff] %v813
          %s819 = sadd.s32 %s268, 36
          %s820 = sld [smem:[#allocation3 + %s819]]
          %v821 = vstv %s820
          %v822 = vsub.f32 %v256, %v821
          %v823 = vsub.f32 %v257, %v821
          %v824 = vsub.f32 %v258, %v821
          %v825 = vsub.f32 %v259, %v821
          %s826 = sadd.s32 %s268, 37
          %s827 = sld [smem:[#allocation3 + %s826]]
          %v828 = vstv %s827
          %v829 = vsub.f32 %v260, %v828
          %v830 = vsub.f32 %v261, %v828
          %v831 = vsub.f32 %v262, %v828
          %v832 = vsub.f32 %v263, %v828
          %s833 = sadd.s32 %s268, 38
          %s834 = sld [smem:[#allocation3 + %s833]]
          %v835 = vstv %s834
          %v836 = vsub.f32 %v264, %v835
          %v837 = vsub.f32 %v265, %v835
          %v838 = vsub.f32 %v266, %v835
          %v839 = vsub.f32 %v267, %v835
          %v840 = vmul.f32 %v822, %v822
          %v841 = vmul.f32 %v823, %v823
          %v842 = vmul.f32 %v824, %v824
          %v843 = vmul.f32 %v825, %v825
          %v844 = vmul.f32 %v829, %v829
          %v845 = vmul.f32 %v830, %v830
          %v846 = vmul.f32 %v831, %v831
          %v847 = vmul.f32 %v832, %v832
          %v848 = vadd.f32 %v840, %v844
          %v849 = vadd.f32 %v841, %v845
          %v850 = vadd.f32 %v842, %v846
          %v851 = vadd.f32 %v843, %v847
          %v852 = vmul.f32 %v836, %v836
          %v853 = vmul.f32 %v837, %v837
          %v854 = vmul.f32 %v838, %v838
          %v855 = vmul.f32 %v839, %v839
          %v856 = vadd.f32 %v848, %v852
          %v857 = vadd.f32 %v849, %v853
          %v858 = vadd.f32 %v850, %v854
          %v859 = vadd.f32 %v851, %v855
          %s860 = scalar_lea.vmem %s162, 384 [#allocation8]
          %861 = vst [vmem:[%s860] sm:$0xff] %v856
          %862 = vst [vmem:[%s860 + $0x8] sm:$0xff] %v857
          %863 = vst [vmem:[%s860 + $0x10] sm:$0xff] %v858
          %864 = vst [vmem:[%s860 + $0x18] sm:$0xff] %v859
          %s865 = sadd.s32 %s268, 39
          %s866 = sld [smem:[#allocation3 + %s865]]
          %v867 = vstv %s866
          %v868 = vsub.f32 %v256, %v867
          %v869 = vsub.f32 %v257, %v867
          %v870 = vsub.f32 %v258, %v867
          %v871 = vsub.f32 %v259, %v867
          %s872 = sadd.s32 %s268, 40
          %s873 = sld [smem:[#allocation3 + %s872]]
          %v874 = vstv %s873
          %v875 = vsub.f32 %v260, %v874
          %v876 = vsub.f32 %v261, %v874
          %v877 = vsub.f32 %v262, %v874
          %v878 = vsub.f32 %v263, %v874
          %s879 = sadd.s32 %s268, 41
          %s880 = sld [smem:[#allocation3 + %s879]]
          %v881 = vstv %s880
          %v882 = vsub.f32 %v264, %v881
          %v883 = vsub.f32 %v265, %v881
          %v884 = vsub.f32 %v266, %v881
          %v885 = vsub.f32 %v267, %v881
          %v886 = vmul.f32 %v868, %v868
          %v887 = vmul.f32 %v869, %v869
          %v888 = vmul.f32 %v870, %v870
          %v889 = vmul.f32 %v871, %v871
          %v890 = vmul.f32 %v875, %v875
          %v891 = vmul.f32 %v876, %v876
          %v892 = vmul.f32 %v877, %v877
          %v893 = vmul.f32 %v878, %v878
          %v894 = vadd.f32 %v886, %v890
          %v895 = vadd.f32 %v887, %v891
          %v896 = vadd.f32 %v888, %v892
          %v897 = vadd.f32 %v889, %v893
          %v898 = vmul.f32 %v882, %v882
          %v899 = vmul.f32 %v883, %v883
          %v900 = vmul.f32 %v884, %v884
          %v901 = vmul.f32 %v885, %v885
          %v902 = vadd.f32 %v894, %v898
          %v903 = vadd.f32 %v895, %v899
          %v904 = vadd.f32 %v896, %v900
          %v905 = vadd.f32 %v897, %v901
          %s906 = scalar_lea.vmem %s162, 416 [#allocation8]
          %907 = vst [vmem:[%s906] sm:$0xff] %v902
          %908 = vst [vmem:[%s906 + $0x8] sm:$0xff] %v903
          %909 = vst [vmem:[%s906 + $0x10] sm:$0xff] %v904
          %910 = vst [vmem:[%s906 + $0x18] sm:$0xff] %v905
          %s911 = sadd.s32 %s268, 42
          %s912 = sld [smem:[#allocation3 + %s911]]
          %v913 = vstv %s912
          %v914 = vsub.f32 %v256, %v913
          %v915 = vsub.f32 %v257, %v913
          %v916 = vsub.f32 %v258, %v913
          %v917 = vsub.f32 %v259, %v913
          %s918 = sadd.s32 %s268, 43
          %s919 = sld [smem:[#allocation3 + %s918]]
          %v920 = vstv %s919
          %v921 = vsub.f32 %v260, %v920
          %v922 = vsub.f32 %v261, %v920
          %v923 = vsub.f32 %v262, %v920
          %v924 = vsub.f32 %v263, %v920
          %s925 = sadd.s32 %s268, 44
          %s926 = sld [smem:[#allocation3 + %s925]]
          %v927 = vstv %s926
          %v928 = vsub.f32 %v264, %v927
          %v929 = vsub.f32 %v265, %v927
          %v930 = vsub.f32 %v266, %v927
          %v931 = vsub.f32 %v267, %v927
          %v932 = vmul.f32 %v914, %v914
          %v933 = vmul.f32 %v915, %v915
          %v934 = vmul.f32 %v916, %v916
          %v935 = vmul.f32 %v917, %v917
          %v936 = vmul.f32 %v921, %v921
          %v937 = vmul.f32 %v922, %v922
          %v938 = vmul.f32 %v923, %v923
          %v939 = vmul.f32 %v924, %v924
          %v940 = vadd.f32 %v932, %v936
          %v941 = vadd.f32 %v933, %v937
          %v942 = vadd.f32 %v934, %v938
          %v943 = vadd.f32 %v935, %v939
          %v944 = vmul.f32 %v928, %v928
          %v945 = vmul.f32 %v929, %v929
          %v946 = vmul.f32 %v930, %v930
          %v947 = vmul.f32 %v931, %v931
          %v948 = vadd.f32 %v940, %v944
          %v949 = vadd.f32 %v941, %v945
          %v950 = vadd.f32 %v942, %v946
          %v951 = vadd.f32 %v943, %v947
          %s952 = scalar_lea.vmem %s162, 448 [#allocation8]
          %953 = vst [vmem:[%s952] sm:$0xff] %v948
          %954 = vst [vmem:[%s952 + $0x8] sm:$0xff] %v949
          %955 = vst [vmem:[%s952 + $0x10] sm:$0xff] %v950
          %956 = vst [vmem:[%s952 + $0x18] sm:$0xff] %v951
          %s957 = sadd.s32 %s268, 45
          %s958 = sld [smem:[#allocation3 + %s957]]
          %v959 = vstv %s958
          %v960 = vsub.f32 %v256, %v959
          %v961 = vsub.f32 %v257, %v959
          %v962 = vsub.f32 %v258, %v959
          %v963 = vsub.f32 %v259, %v959
          %s964 = sadd.s32 %s268, 46
          %s965 = sld [smem:[#allocation3 + %s964]]
          %v966 = vstv %s965
          %v967 = vsub.f32 %v260, %v966
          %v968 = vsub.f32 %v261, %v966
          %v969 = vsub.f32 %v262, %v966
          %v970 = vsub.f32 %v263, %v966
          %s971 = sadd.s32 %s268, 47
          %s972 = sld [smem:[#allocation3 + %s971]]
          %v973 = vstv %s972
          %v974 = vsub.f32 %v264, %v973
          %v975 = vsub.f32 %v265, %v973
          %v976 = vsub.f32 %v266, %v973
          %v977 = vsub.f32 %v267, %v973
          %v978 = vmul.f32 %v960, %v960
          %v979 = vmul.f32 %v961, %v961
          %v980 = vmul.f32 %v962, %v962
          %v981 = vmul.f32 %v963, %v963
          %v982 = vmul.f32 %v967, %v967
          %v983 = vmul.f32 %v968, %v968
          %v984 = vmul.f32 %v969, %v969
          %v985 = vmul.f32 %v970, %v970
          %v986 = vadd.f32 %v978, %v982
          %v987 = vadd.f32 %v979, %v983
          %v988 = vadd.f32 %v980, %v984
          %v989 = vadd.f32 %v981, %v985
          %v990 = vmul.f32 %v974, %v974
          %v991 = vmul.f32 %v975, %v975
          %v992 = vmul.f32 %v976, %v976
          %v993 = vmul.f32 %v977, %v977
          %v994 = vadd.f32 %v986, %v990
          %v995 = vadd.f32 %v987, %v991
          %v996 = vadd.f32 %v988, %v992
          %v997 = vadd.f32 %v989, %v993
          %s998 = scalar_lea.vmem %s162, 480 [#allocation8]
          %999 = vst [vmem:[%s998] sm:$0xff] %v994
          %1000 = vst [vmem:[%s998 + $0x8] sm:$0xff] %v995
          %1001 = vst [vmem:[%s998 + $0x10] sm:$0xff] %v996
          %1002 = vst [vmem:[%s998 + $0x18] sm:$0xff] %v997
          %s1003 = sadd.s32 %s268, 48
          %s1004 = sld [smem:[#allocation3 + %s1003]]
          %v1005 = vstv %s1004
          %v1006 = vsub.f32 %v256, %v1005
          %v1007 = vsub.f32 %v257, %v1005
          %v1008 = vsub.f32 %v258, %v1005
          %v1009 = vsub.f32 %v259, %v1005
          %s1010 = sadd.s32 %s268, 49
          %s1011 = sld [smem:[#allocation3 + %s1010]]
          %v1012 = vstv %s1011
          %v1013 = vsub.f32 %v260, %v1012
          %v1014 = vsub.f32 %v261, %v1012
          %v1015 = vsub.f32 %v262, %v1012
          %v1016 = vsub.f32 %v263, %v1012
          %s1017 = sadd.s32 %s268, 50
          %s1018 = sld [smem:[#allocation3 + %s1017]]
          %v1019 = vstv %s1018
          %v1020 = vsub.f32 %v264, %v1019
          %v1021 = vsub.f32 %v265, %v1019
          %v1022 = vsub.f32 %v266, %v1019
          %v1023 = vsub.f32 %v267, %v1019
          %v1024 = vmul.f32 %v1006, %v1006
          %v1025 = vmul.f32 %v1007, %v1007
          %v1026 = vmul.f32 %v1008, %v1008
          %v1027 = vmul.f32 %v1009, %v1009
          %v1028 = vmul.f32 %v1013, %v1013
          %v1029 = vmul.f32 %v1014, %v1014
          %v1030 = vmul.f32 %v1015, %v1015
          %v1031 = vmul.f32 %v1016, %v1016
          %v1032 = vadd.f32 %v1024, %v1028
          %v1033 = vadd.f32 %v1025, %v1029
          %v1034 = vadd.f32 %v1026, %v1030
          %v1035 = vadd.f32 %v1027, %v1031
          %v1036 = vmul.f32 %v1020, %v1020
          %v1037 = vmul.f32 %v1021, %v1021
          %v1038 = vmul.f32 %v1022, %v1022
          %v1039 = vmul.f32 %v1023, %v1023
          %v1040 = vadd.f32 %v1032, %v1036
          %v1041 = vadd.f32 %v1033, %v1037
          %v1042 = vadd.f32 %v1034, %v1038
          %v1043 = vadd.f32 %v1035, %v1039
          %s1044 = scalar_lea.vmem %s162, 512 [#allocation8]
          %1045 = vst [vmem:[%s1044] sm:$0xff] %v1040
          %1046 = vst [vmem:[%s1044 + $0x8] sm:$0xff] %v1041
          %1047 = vst [vmem:[%s1044 + $0x10] sm:$0xff] %v1042
          %1048 = vst [vmem:[%s1044 + $0x18] sm:$0xff] %v1043
          %s1049 = sadd.s32 %s268, 51
          %s1050 = sld [smem:[#allocation3 + %s1049]]
          %v1051 = vstv %s1050
          %v1052 = vsub.f32 %v256, %v1051
          %v1053 = vsub.f32 %v257, %v1051
          %v1054 = vsub.f32 %v258, %v1051
          %v1055 = vsub.f32 %v259, %v1051
          %s1056 = sadd.s32 %s268, 52
          %s1057 = sld [smem:[#allocation3 + %s1056]]
          %v1058 = vstv %s1057
          %v1059 = vsub.f32 %v260, %v1058
          %v1060 = vsub.f32 %v261, %v1058
          %v1061 = vsub.f32 %v262, %v1058
          %v1062 = vsub.f32 %v263, %v1058
          %s1063 = sadd.s32 %s268, 53
          %s1064 = sld [smem:[#allocation3 + %s1063]]
          %v1065 = vstv %s1064
          %v1066 = vsub.f32 %v264, %v1065
          %v1067 = vsub.f32 %v265, %v1065
          %v1068 = vsub.f32 %v266, %v1065
          %v1069 = vsub.f32 %v267, %v1065
          %v1070 = vmul.f32 %v1052, %v1052
          %v1071 = vmul.f32 %v1053, %v1053
          %v1072 = vmul.f32 %v1054, %v1054
          %v1073 = vmul.f32 %v1055, %v1055
          %v1074 = vmul.f32 %v1059, %v1059
          %v1075 = vmul.f32 %v1060, %v1060
          %v1076 = vmul.f32 %v1061, %v1061
          %v1077 = vmul.f32 %v1062, %v1062
          %v1078 = vadd.f32 %v1070, %v1074
          %v1079 = vadd.f32 %v1071, %v1075
          %v1080 = vadd.f32 %v1072, %v1076
          %v1081 = vadd.f32 %v1073, %v1077
          %v1082 = vmul.f32 %v1066, %v1066
          %v1083 = vmul.f32 %v1067, %v1067
          %v1084 = vmul.f32 %v1068, %v1068
          %v1085 = vmul.f32 %v1069, %v1069
          %v1086 = vadd.f32 %v1078, %v1082
          %v1087 = vadd.f32 %v1079, %v1083
          %v1088 = vadd.f32 %v1080, %v1084
          %v1089 = vadd.f32 %v1081, %v1085
          %s1090 = scalar_lea.vmem %s162, 544 [#allocation8]
          %1091 = vst [vmem:[%s1090] sm:$0xff] %v1086
          %1092 = vst [vmem:[%s1090 + $0x8] sm:$0xff] %v1087
          %1093 = vst [vmem:[%s1090 + $0x10] sm:$0xff] %v1088
          %1094 = vst [vmem:[%s1090 + $0x18] sm:$0xff] %v1089
          %s1095 = sadd.s32 %s268, 54
          %s1096 = sld [smem:[#allocation3 + %s1095]]
          %v1097 = vstv %s1096
          %v1098 = vsub.f32 %v256, %v1097
          %v1099 = vsub.f32 %v257, %v1097
          %v1100 = vsub.f32 %v258, %v1097
          %v1101 = vsub.f32 %v259, %v1097
          %s1102 = sadd.s32 %s268, 55
          %s1103 = sld [smem:[#allocation3 + %s1102]]
          %v1104 = vstv %s1103
          %v1105 = vsub.f32 %v260, %v1104
          %v1106 = vsub.f32 %v261, %v1104
          %v1107 = vsub.f32 %v262, %v1104
          %v1108 = vsub.f32 %v263, %v1104
          %s1109 = sadd.s32 %s268, 56
          %s1110 = sld [smem:[#allocation3 + %s1109]]
          %v1111 = vstv %s1110
          %v1112 = vsub.f32 %v264, %v1111
          %v1113 = vsub.f32 %v265, %v1111
          %v1114 = vsub.f32 %v266, %v1111
          %v1115 = vsub.f32 %v267, %v1111
          %v1116 = vmul.f32 %v1098, %v1098
          %v1117 = vmul.f32 %v1099, %v1099
          %v1118 = vmul.f32 %v1100, %v1100
          %v1119 = vmul.f32 %v1101, %v1101
          %v1120 = vmul.f32 %v1105, %v1105
          %v1121 = vmul.f32 %v1106, %v1106
          %v1122 = vmul.f32 %v1107, %v1107
          %v1123 = vmul.f32 %v1108, %v1108
          %v1124 = vadd.f32 %v1116, %v1120
          %v1125 = vadd.f32 %v1117, %v1121
          %v1126 = vadd.f32 %v1118, %v1122
          %v1127 = vadd.f32 %v1119, %v1123
          %v1128 = vmul.f32 %v1112, %v1112
          %v1129 = vmul.f32 %v1113, %v1113
          %v1130 = vmul.f32 %v1114, %v1114
          %v1131 = vmul.f32 %v1115, %v1115
          %v1132 = vadd.f32 %v1124, %v1128
          %v1133 = vadd.f32 %v1125, %v1129
          %v1134 = vadd.f32 %v1126, %v1130
          %v1135 = vadd.f32 %v1127, %v1131
          %s1136 = scalar_lea.vmem %s162, 576 [#allocation8]
          %1137 = vst [vmem:[%s1136] sm:$0xff] %v1132
          %1138 = vst [vmem:[%s1136 + $0x8] sm:$0xff] %v1133
          %1139 = vst [vmem:[%s1136 + $0x10] sm:$0xff] %v1134
          %1140 = vst [vmem:[%s1136 + $0x18] sm:$0xff] %v1135
          %s1141 = sadd.s32 %s268, 57
          %s1142 = sld [smem:[#allocation3 + %s1141]]
          %v1143 = vstv %s1142
          %v1144 = vsub.f32 %v256, %v1143
          %v1145 = vsub.f32 %v257, %v1143
          %v1146 = vsub.f32 %v258, %v1143
          %v1147 = vsub.f32 %v259, %v1143
          %s1148 = sadd.s32 %s268, 58
          %s1149 = sld [smem:[#allocation3 + %s1148]]
          %v1150 = vstv %s1149
          %v1151 = vsub.f32 %v260, %v1150
          %v1152 = vsub.f32 %v261, %v1150
          %v1153 = vsub.f32 %v262, %v1150
          %v1154 = vsub.f32 %v263, %v1150
          %s1155 = sadd.s32 %s268, 59
          %s1156 = sld [smem:[#allocation3 + %s1155]]
          %v1157 = vstv %s1156
          %v1158 = vsub.f32 %v264, %v1157
          %v1159 = vsub.f32 %v265, %v1157
          %v1160 = vsub.f32 %v266, %v1157
          %v1161 = vsub.f32 %v267, %v1157
          %v1162 = vmul.f32 %v1144, %v1144
          %v1163 = vmul.f32 %v1145, %v1145
          %v1164 = vmul.f32 %v1146, %v1146
          %v1165 = vmul.f32 %v1147, %v1147
          %v1166 = vmul.f32 %v1151, %v1151
          %v1167 = vmul.f32 %v1152, %v1152
          %v1168 = vmul.f32 %v1153, %v1153
          %v1169 = vmul.f32 %v1154, %v1154
          %v1170 = vadd.f32 %v1162, %v1166
          %v1171 = vadd.f32 %v1163, %v1167
          %v1172 = vadd.f32 %v1164, %v1168
          %v1173 = vadd.f32 %v1165, %v1169
          %v1174 = vmul.f32 %v1158, %v1158
          %v1175 = vmul.f32 %v1159, %v1159
          %v1176 = vmul.f32 %v1160, %v1160
          %v1177 = vmul.f32 %v1161, %v1161
          %v1178 = vadd.f32 %v1170, %v1174
          %v1179 = vadd.f32 %v1171, %v1175
          %v1180 = vadd.f32 %v1172, %v1176
          %v1181 = vadd.f32 %v1173, %v1177
          %s1182 = scalar_lea.vmem %s162, 608 [#allocation8]
          %1183 = vst [vmem:[%s1182] sm:$0xff] %v1178
          %1184 = vst [vmem:[%s1182 + $0x8] sm:$0xff] %v1179
          %1185 = vst [vmem:[%s1182 + $0x10] sm:$0xff] %v1180
          %1186 = vst [vmem:[%s1182 + $0x18] sm:$0xff] %v1181
          %s1187 = sadd.s32 %s268, 60
          %s1188 = sld [smem:[#allocation3 + %s1187]]
          %v1189 = vstv %s1188
          %v1190 = vsub.f32 %v256, %v1189
          %v1191 = vsub.f32 %v257, %v1189
          %v1192 = vsub.f32 %v258, %v1189
          %v1193 = vsub.f32 %v259, %v1189
          %s1194 = sadd.s32 %s268, 61
          %s1195 = sld [smem:[#allocation3 + %s1194]]
          %v1196 = vstv %s1195
          %v1197 = vsub.f32 %v260, %v1196
          %v1198 = vsub.f32 %v261, %v1196
          %v1199 = vsub.f32 %v262, %v1196
          %v1200 = vsub.f32 %v263, %v1196
          %s1201 = sadd.s32 %s268, 62
          %s1202 = sld [smem:[#allocation3 + %s1201]]
          %v1203 = vstv %s1202
          %v1204 = vsub.f32 %v264, %v1203
          %v1205 = vsub.f32 %v265, %v1203
          %v1206 = vsub.f32 %v266, %v1203
          %v1207 = vsub.f32 %v267, %v1203
          %v1208 = vmul.f32 %v1190, %v1190
          %v1209 = vmul.f32 %v1191, %v1191
          %v1210 = vmul.f32 %v1192, %v1192
          %v1211 = vmul.f32 %v1193, %v1193
          %v1212 = vmul.f32 %v1197, %v1197
          %v1213 = vmul.f32 %v1198, %v1198
          %v1214 = vmul.f32 %v1199, %v1199
          %v1215 = vmul.f32 %v1200, %v1200
          %v1216 = vadd.f32 %v1208, %v1212
          %v1217 = vadd.f32 %v1209, %v1213
          %v1218 = vadd.f32 %v1210, %v1214
          %v1219 = vadd.f32 %v1211, %v1215
          %v1220 = vmul.f32 %v1204, %v1204
          %v1221 = vmul.f32 %v1205, %v1205
          %v1222 = vmul.f32 %v1206, %v1206
          %v1223 = vmul.f32 %v1207, %v1207
          %v1224 = vadd.f32 %v1216, %v1220
          %v1225 = vadd.f32 %v1217, %v1221
          %v1226 = vadd.f32 %v1218, %v1222
          %v1227 = vadd.f32 %v1219, %v1223
          %s1228 = scalar_lea.vmem %s162, 640 [#allocation8]
          %1229 = vst [vmem:[%s1228] sm:$0xff] %v1224
          %1230 = vst [vmem:[%s1228 + $0x8] sm:$0xff] %v1225
          %1231 = vst [vmem:[%s1228 + $0x10] sm:$0xff] %v1226
          %1232 = vst [vmem:[%s1228 + $0x18] sm:$0xff] %v1227
        $region36: #{tpu_custom_call.1} parent=23 // pred_fallthru
          _
        %s1233 = sand.u32 %s78, 1
        %s1234 = scalar_lea.sflag [#allocation7], %s1233
        %s1235 = sand.u32 %s78, 1
        %s1236 = smul.addr %s1235, 672
        %s1237 = scalar_lea.vmem [#allocation8], %s1236
        // Predicated region
        $region37: #{tpu_custom_call.1} parent=23 // pred_check
          %p1238 = pneg %p88
        $region38: #{tpu_custom_call.1} parent=23 // pred_check_branch
          %1240 = sbr.rel (%p1238) target = $region40
        $region39: #{tpu_custom_call.1} parent=23 // pred_region
          %s1242 = ssub.s32 10752, 10752
          %1243 = vsyncadd %s1234, %s1242
          %s1244 = smul.addr %s33, 4
          %s1245 = smul.addr %s32, 84
          %s1246 = sadd.s32 %s1244, %s1245
          %s1247 = smul.addr %s1246, 128
          %s1248 = scalar_lea.hbm %s3, %s1247
          %s1249 = sshll.u32 %s1237, 4
          %s1250 = int_to_ptr.vmem [resolvable:$true] %s1249
          %1255 = dma.vmem_to_hbm [thread:$0]  %s1250, 10752, %s1248, %s1234, 512, 512, 32
        $region40: #{tpu_custom_call.1} parent=23 // pred_fallthru
          _
      $region24: #{tpu_custom_call.1} parent=5 // pred_fallthru
        _
      %p1256 = scmp.le.s32.totalorder 2, %s23
      // Predicated region
      $region41: #{tpu_custom_call.1} parent=5 // pred_check
        %p1257 = pneg %p1256
      $region42: #{tpu_custom_call.1} parent=5 // pred_check_branch
        %1259 = sbr.rel (%p1257) target = $region44
      $region43: #{tpu_custom_call.1} parent=5 // pred_region
        %s1260 = ssub.s32 %s23, 2
        // Predicated region
        $region45: #{tpu_custom_call.1} parent=43 // pred_check
          %p1261 = pneg %p94
        $region46: #{tpu_custom_call.1} parent=43 // pred_check_branch
          %1263 = sbr.rel (%p1261) target = $region48
        $region47: #{tpu_custom_call.1} parent=43 // pred_region
          %s1264 = sand.u32 %s79, 1
          %s1265 = scalar_lea.sflag [#allocation7], %s1264
          %s1266 = sand.u32 %s79, 1
          %s1267 = smul.addr %s1266, 672
          %s1268 = scalar_lea.vmem [#allocation8], %s1267
          %1269 = dma.done %s1265, 10752
        $region48: #{tpu_custom_call.1} parent=43 // pred_fallthru
          _
      $region44: #{tpu_custom_call.1} parent=5 // pred_fallthru
        _
    $region6: #{tpu_custom_call.1} parent=1 // loop_footer
      %s27 = sadd.s32 1, %s23
    $region7: #{tpu_custom_call.1} parent=1 // loop_footer_branch
      %22 = sbr.rel target = $region3
    $region8: #{tpu_custom_call.1} parent=1 // loop_exit
      _
    %1270 = vsyncpa [#allocation6], 1
    %s1271 = scalar_lea.sflag [#allocation6], 1
    %1272 = vsyncpa %s1271, 1
    %1273 = vsyncpa [#allocation7], 1
    %s1274 = scalar_lea.sflag [#allocation7], 1
    %1275 = vsyncpa %s1274, 1

</llo_original>
